<compile_context>
chip_gen: v7x
topology: tpu7x:2x2x1
jax: 0.10.0
libtpu: 0.0.40
codegen_flags: <defaults>
</compile_context>

<pallas_src>
import functools
import math

import jax
import jax.numpy as jnp
from jax import lax
from jax.experimental import pallas as pl
from jax.experimental.pallas import tpu as pltpu


def _layer_norm(x, gamma, beta, eps=1e-5):
    mu = jnp.mean(x, axis=-1, keepdims=True)
    var = jnp.mean((x - mu) ** 2, axis=-1, keepdims=True)
    return (x - mu) * lax.rsqrt(var + eps) * gamma + beta


def encoding_layer_kernel(
    x_ref,                      # (Bt, S, E)
    wqkv_ref, bqkv_ref,         # (E, 3*H*D) bf16, (1, 3*H*D) f32
    wo_ref, bo_ref,             # (H*D, E) bf16,   (1, E) f32
    g1_ref, be1_ref,            # (1, E) f32       layer_norm_1
    w1_ref, b1_ref,             # (E, F) bf16, (1, F) f32   feed_forward[0]
    w2_ref, b2_ref,             # (F, E) bf16, (1, E) f32   feed_forward[2]
    g2_ref, be2_ref,            # (1, E) f32       layer_norm_2
    out_ref,                    # (Bt, S, E)
    *rest,                      # [mat_ref (Bt,H,S,S) bf16]?, ctx_ref scratch (Bt*S, H*D) f32
    masked: bool, num_heads: int, head_dim: int,
):
    if len(rest) == 2:
        mat_ref, ctx_ref = rest
    else:
        mat_ref = None
        (ctx_ref,) = rest

    Bt, S, E = x_ref.shape
    H, D = num_heads, head_dim
    HD = H * D

    x = x_ref[...].astype(jnp.float32)           # (Bt, S, E)
    x2d = x.reshape(Bt * S, E)

    # ---- fused QKV projection: one lane-dense bf16 matmul, f32 accumulation ----
    qkv = jnp.dot(x2d.astype(jnp.bfloat16), wqkv_ref[...],
                  preferred_element_type=jnp.float32) + bqkv_ref[...]    # (Bt*S, 3*H*D)

    scale = jnp.float32(1.0 / math.sqrt(D))

    # ---- causal mask: built once, broadcast to (Bt,S,S) once (hoisted out of head loop) ----
    if masked:
        row = lax.broadcasted_iota(jnp.int32, (S, S), 0)
        col = lax.broadcasted_iota(jnp.int32, (S, S), 1)
        neg = jnp.where(col > row, jnp.float32(-1e30), jnp.float32(0.0))
        neg_mask = jnp.broadcast_to(neg[None, :, :], (Bt, S, S))
    else:
        neg_mask = None

    # ---- per-head attention, all in f32 (operands are lane-sparse: no bf16 round-trips).
    # Each head's context lands in its static lane slice of ctx_ref; the output
    # projection is ONE merged matmul against the whole Wo after the loop. ----
    for h in range(H):
        q = qkv[:, h * D:(h + 1) * D].reshape(Bt, S, D)
        k = qkv[:, HD + h * D:HD + (h + 1) * D].reshape(Bt, S, D)
        v = qkv[:, 2 * HD + h * D:2 * HD + (h + 1) * D].reshape(Bt, S, D)

        scores = jnp.einsum("bqd,bkd->bqk", q, k,
                            preferred_element_type=jnp.float32) * scale   # (Bt, S, S)
        if neg_mask is not None:
            scores = scores + neg_mask

        m = jnp.max(scores, axis=-1, keepdims=True)
        p = jnp.exp(scores - m)
        attn = p * pl.reciprocal(jnp.sum(p, axis=-1, keepdims=True), approx=True)

        if mat_ref is not None:
            mat_ref[:, h, :, :] = attn.astype(mat_ref.dtype)              # bf16 writeback

        head_out = jnp.einsum("bqk,bkd->bqd", attn, v,
                              preferred_element_type=jnp.float32)          # (Bt, S, D)
        ctx_ref[:, h * D:(h + 1) * D] = head_out.reshape(Bt * S, D)

    # ---- merged output projection: contraction depth H*D, single MXU pass ----
    mha = jnp.dot(ctx_ref[...].astype(jnp.bfloat16), wo_ref[...],
                  preferred_element_type=jnp.float32) + bo_ref[...]        # (Bt*S, E)

    # ---- residual + layer_norm_1 (f32) ----
    ff_in = _layer_norm(mha + x2d, g1_ref[...], be1_ref[...])

    # ---- feed forward: Linear -> ReLU -> Linear (bf16 matmuls, f32 accum) ----
    h1 = jnp.dot(ff_in.astype(jnp.bfloat16), w1_ref[...],
                 preferred_element_type=jnp.float32) + b1_ref[...]
    h1 = jnp.maximum(h1, 0.0)
    ffo = jnp.dot(h1.astype(jnp.bfloat16), w2_ref[...],
                  preferred_element_type=jnp.float32) + b2_ref[...]

    # ---- residual + layer_norm_2 (f32) ----
    out = _layer_norm(ffo + ff_in, g2_ref[...], be2_ref[...])
    out_ref[...] = out.reshape(Bt, S, E).astype(out_ref.dtype)


def init_params(key, num_heads, head_dim, embed_dim, ff_inner_dim):
    ks = jax.random.split(key, 8)
    scl = 0.05
    return {
        "wq": scl * jax.random.normal(ks[0], (num_heads, embed_dim, head_dim), jnp.float32),
        "bq": jnp.zeros((num_heads, 1, head_dim), jnp.float32),
        "wk": scl * jax.random.normal(ks[1], (num_heads, embed_dim, head_dim), jnp.float32),
        "bk": jnp.zeros((num_heads, 1, head_dim), jnp.float32),
        "wv": scl * jax.random.normal(ks[2], (num_heads, embed_dim, head_dim), jnp.float32),
        "bv": jnp.zeros((num_heads, 1, head_dim), jnp.float32),
        "wo": scl * jax.random.normal(ks[3], (num_heads * head_dim, embed_dim), jnp.float32),
        "bo": jnp.zeros((1, embed_dim), jnp.float32),
        "g1": jnp.ones((1, embed_dim), jnp.float32),
        "be1": jnp.zeros((1, embed_dim), jnp.float32),
        "w1": scl * jax.random.normal(ks[4], (embed_dim, ff_inner_dim), jnp.float32),
        "b1": 0.01 * jax.random.normal(ks[5], (1, ff_inner_dim), jnp.float32),
        "w2": scl * jax.random.normal(ks[6], (ff_inner_dim, embed_dim), jnp.float32),
        "b2": 0.01 * jax.random.normal(ks[7], (1, embed_dim), jnp.float32),
        "g2": jnp.ones((1, embed_dim), jnp.float32),
        "be2": jnp.zeros((1, embed_dim), jnp.float32),
    }


def _pack_params(params):
    """Pack per-head Q/K/V weights into one (E, 3*H*D) bf16 matrix (+ f32 bias row)."""
    def pack_w(w):   # (H, E, D) -> (E, H*D)
        H, E, D = w.shape
        return jnp.transpose(w, (1, 0, 2)).reshape(E, H * D)

    def pack_b(b):   # (H, 1, D) -> (1, H*D)
        H, _, D = b.shape
        return jnp.transpose(b, (1, 0, 2)).reshape(1, H * D)

    wqkv = jnp.concatenate(
        [pack_w(params["wq"]), pack_w(params["wk"]), pack_w(params["wv"])], axis=1
    ).astype(jnp.bfloat16)
    bqkv = jnp.concatenate(
        [pack_b(params["bq"]), pack_b(params["bk"]), pack_b(params["bv"])], axis=1
    ).astype(jnp.float32)

    return [
        wqkv, bqkv,
        params["wo"].astype(jnp.bfloat16), params["bo"].astype(jnp.float32),
        params["g1"].astype(jnp.float32), params["be1"].astype(jnp.float32),
        params["w1"].astype(jnp.bfloat16), params["b1"].astype(jnp.float32),
        params["w2"].astype(jnp.bfloat16), params["b2"].astype(jnp.float32),
        params["g2"].astype(jnp.float32), params["be2"].astype(jnp.float32),
    ]


def _vmem_capacity_bytes():
    try:
        info = pltpu.get_tpu_info()
        cap = getattr(info, "vmem_capacity_bytes", None)
        if cap:
            return int(cap)
    except Exception:
        pass
    return 128 << 20


def _pick_batch_tile(B, S, E, H, itemsize, weight_bytes, return_matrix,
                     min_steps, row_cap, vmem_budget):
    """Largest divisor of B s.t. grid >= min_steps, Bt*S <= row_cap, blocks fit VMEM."""
    best = 1
    for d in range(1, B + 1):
        if B % d:
            continue
        steps = B // d
        if d > 1 and steps < min_steps:       # grid-length floor dominates tile size
            continue
        if d > 1 and d * S > row_cap:
            continue
        blocks = 2 * d * S * E * itemsize     # x block + out block
        if return_matrix:
            blocks += d * H * S * S * 2       # bf16 matrix block
        need = 2 * blocks + weight_bytes + (4 << 20)   # x2: pipeline double-buffering
        if d > 1 and need > vmem_budget:
            continue
        best = d
    return best


def encoding_layer_forward(x, params, *, num_heads, head_dim, masked,
                           return_matrix=True, batch_tile=None):
    B, S, E = x.shape
    H, D = num_heads, head_dim
    HD = H * D
    F = params["w1"].shape[1]
    plist = _pack_params(params)
    itemsize = jnp.dtype(x.dtype).itemsize
    weight_bytes = sum(int(p.size) * jnp.dtype(p.dtype).itemsize for p in plist)

    # ---- generation-aware tiling & VMEM budgeting ----
    # v7x-class parts: 64 MiB VMEM/TC, 2 TCs -> smaller tiles, >=4 grid steps, 56 MiB limit.
    # v5e/v6e: 128 MiB VMEM, 1 TC -> bigger tiles allowed, >=2 grid steps, 112 MiB limit.
    vmem_cap = _vmem_capacity_bytes()
    small_vmem = vmem_cap <= (64 << 20)
    min_steps = 4 if small_vmem else 2
    row_cap = 256 if small_vmem else 512
    vmem_budget = (56 << 20) if small_vmem else (112 << 20)

    if batch_tile is None:
        batch_tile = _pick_batch_tile(B, S, E, H, itemsize, weight_bytes,
                                      return_matrix, min_steps, row_cap, vmem_budget)
    Bt = batch_tile
    assert B % Bt == 0, "batch_tile must divide batch"
    grid = (B // Bt,)

    # Weights never change block index -> single-buffer them (halves their VMEM footprint).
    def weight_spec(arr):
        n = arr.ndim
        return pl.BlockSpec(arr.shape, lambda b, n=n: (0,) * n,
                            pipeline_mode=pl.Buffered(buffer_count=1))

    in_specs = [pl.BlockSpec((Bt, S, E), lambda b: (b, 0, 0))] + [weight_spec(p) for p in plist]

    out_spec_x = pl.BlockSpec((Bt, S, E), lambda b: (b, 0, 0))
    if return_matrix:
        out_shape = (jax.ShapeDtypeStruct((B, S, E), x.dtype),
                     jax.ShapeDtypeStruct((B, H, S, S), jnp.bfloat16))
        out_specs = (out_spec_x,
                     pl.BlockSpec((Bt, H, S, S), lambda b: (b, 0, 0, 0)))
    else:
        out_shape = jax.ShapeDtypeStruct((B, S, E), x.dtype)
        out_specs = out_spec_x

    # VMEM need: double-buffered in/out (+ bf16 matrix) blocks + single-buffered weights
    # + ctx scratch + headroom, clamped to the generation budget.
    io_bytes = 2 * Bt * S * E * itemsize
    if return_matrix:
        io_bytes += Bt * H * S * S * 2
    vmem_need = 2 * io_bytes + weight_bytes + Bt * S * HD * 4 + (4 << 20)
    vmem_limit = int(min(vmem_budget, max(vmem_need, 16 << 20)))

    flops = B * (2 * S * E * 3 * HD                 # fused QKV projection
                 + H * 4 * S * S * D                # scores + attn @ v
                 + 2 * S * HD * E                   # merged output projection
                 + 4 * S * E * F)                   # feed-forward
    transcendentals = B * H * S * (S + 1)           # exp + approx reciprocal
    bytes_accessed = (2 * B * S * E * itemsize + weight_bytes
                      + (B * H * S * S * 2 if return_matrix else 0))

    kernel = functools.partial(encoding_layer_kernel, masked=masked,
                               num_heads=H, head_dim=D)

    result = pl.pallas_call(
        kernel,
        out_shape=out_shape,
        grid=grid,
        in_specs=in_specs,
        out_specs=out_specs,
        scratch_shapes=[pltpu.VMEM((Bt * S, HD), jnp.float32)],   # merged-head ctx buffer
        compiler_params=pltpu.CompilerParams(
            dimension_semantics=("parallel",),
            vmem_limit_bytes=vmem_limit),
        cost_estimate=pl.CostEstimate(flops=int(flops),
                                      transcendentals=int(transcendentals),
                                      bytes_accessed=int(bytes_accessed)),
    )(x, *plist)

    if return_matrix:
        out, matrix = result
        return out, matrix
    return result, None


def encoding_layer_reference(x, params, *, num_heads, head_dim, masked):
    """Pure-JAX f32 reference mirroring the assumed module semantics."""
    B, S, E = x.shape
    D = head_dim

    def ln(v, g, b, eps=1e-5):
        mu = jnp.mean(v, axis=-1, keepdims=True)
        var = jnp.mean((v - mu) ** 2, axis=-1, keepdims=True)
        return (v - mu) / jnp.sqrt(var + eps) * g + b

    heads, mats = [], []
    for h in range(num_heads):
        q = x @ params["wq"][h] + params["bq"][h]
        k = x @ params["wk"][h] + params["bk"][h]
        v = x @ params["wv"][h] + params["bv"][h]
        s = jnp.einsum("bqd,bkd->bqk", q, k) / jnp.sqrt(jnp.float32(D))
        if masked:
            row = lax.broadcasted_iota(jnp.int32, (S, S), 0)
            col = lax.broadcasted_iota(jnp.int32, (S, S), 1)
            s = jnp.where(col > row, jnp.float32(-1e30), s)
        a = jax.nn.softmax(s, axis=-1)
        mats.append(a)
        heads.append(jnp.einsum("bqk,bkd->bqd", a, v))
    ctx = jnp.concatenate(heads, axis=-1)
    mha = ctx @ params["wo"] + params["bo"]
    ff_in = ln(mha + x, params["g1"], params["be1"])
    h1 = jax.nn.relu(ff_in @ params["w1"] + params["b1"])
    ffo = h1 @ params["w2"] + params["b2"]
    out = ln(ffo + ff_in, params["g2"], params["be2"])
    return out, jnp.stack(mats, axis=1)


if __name__ == "__main__":
    # Small config consistent with the module:
    #   s_a_unit_count (heads) = 4, dimensions (per-head dim) = 8,
    #   embedding_dims = 32, ff_inner_dim = 64, need_mask = True
    B, S = 2, 8
    NUM_HEADS, HEAD_DIM, EMBED, FF = 4, 8, 32, 64

    key = jax.random.PRNGKey(0)
    kx, kp = jax.random.split(key)
    x = jax.random.normal(kx, (B, S, EMBED), jnp.float32)
    params = init_params(kp, NUM_HEADS, HEAD_DIM, EMBED, FF)

    out, matrix = encoding_layer_forward(
        x, params, num_heads=NUM_HEADS, head_dim=HEAD_DIM, masked=True, return_matrix=True)
    out = jax.block_until_ready(out)
    matrix = jax.block_until_ready(matrix)

    assert out.shape == (B, S, EMBED)
    assert matrix.shape == (B, NUM_HEADS, S, S)
    assert matrix.dtype == jnp.bfloat16
    assert bool(jnp.all(jnp.isfinite(out)))
    assert bool(jnp.all(jnp.isfinite(matrix.astype(jnp.float32))))

    # Correctness vs pure-JAX f32 reference (lane-dense matmuls run in bf16,
    # attention math in f32, matrix returned in bf16).
    ref_out, ref_mat = encoding_layer_reference(
        x, params, num_heads=NUM_HEADS, head_dim=HEAD_DIM, masked=True)
    assert bool(jnp.allclose(out, ref_out, atol=1e-1, rtol=1e-1))
    assert bool(jnp.allclose(matrix.astype(jnp.float32), ref_mat, atol=3e-2))

    # return_matrix=False specialization: the (B,H,S,S) output is compiled out entirely.
    out2, mat2 = encoding_layer_forward(
        x, params, num_heads=NUM_HEADS, head_dim=HEAD_DIM, masked=True, return_matrix=False)
    out2 = jax.block_until_ready(out2)
    assert mat2 is None
    assert bool(jnp.allclose(out, out2, atol=1e-3, rtol=1e-3))

    print("KERNEL_OK")
</pallas_src>

<mosaic_0001>
module attributes {stable_mosaic.version = 11 : i64} {
  func.func @encoding_layer_kernel(%arg0: i32, %arg1: memref<1x8x32xf32, #tpu.memory_space<vmem>>, %arg2: memref<32x96xbf16, #tpu.memory_space<vmem>>, %arg3: memref<1x96xf32, #tpu.memory_space<vmem>>, %arg4: memref<32x32xbf16, #tpu.memory_space<vmem>>, %arg5: memref<1x32xf32, #tpu.memory_space<vmem>>, %arg6: memref<1x32xf32, #tpu.memory_space<vmem>>, %arg7: memref<1x32xf32, #tpu.memory_space<vmem>>, %arg8: memref<32x64xbf16, #tpu.memory_space<vmem>>, %arg9: memref<1x64xf32, #tpu.memory_space<vmem>>, %arg10: memref<64x32xbf16, #tpu.memory_space<vmem>>, %arg11: memref<1x32xf32, #tpu.memory_space<vmem>>, %arg12: memref<1x32xf32, #tpu.memory_space<vmem>>, %arg13: memref<1x32xf32, #tpu.memory_space<vmem>>, %arg14: memref<1x8x32xf32, #tpu.memory_space<vmem>>, %arg15: memref<1x4x8x8xbf16, #tpu.memory_space<vmem>>, %arg16: memref<8x32xf32, #tpu.memory_space<vmem>>) attributes {dimension_semantics = [#tpu.dimension_semantics<parallel>], iteration_bounds = array<i64: 2>, scalar_prefetch = 0 : i64, scratch_operands = 1 : i64, tpu.core_type = #tpu.core_type<tc>, window_params = [{transform_indices = @transform_0, window_bounds = array<i64: 1, 8, 32>}, {pipeline_mode = #tpu.pipeline_mode<synchronous>, transform_indices = @transform_1, window_bounds = array<i64: 32, 96>}, {pipeline_mode = #tpu.pipeline_mode<synchronous>, transform_indices = @transform_2, window_bounds = array<i64: 1, 96>}, {pipeline_mode = #tpu.pipeline_mode<synchronous>, transform_indices = @transform_3, window_bounds = array<i64: 32, 32>}, {pipeline_mode = #tpu.pipeline_mode<synchronous>, transform_indices = @transform_4, window_bounds = array<i64: 1, 32>}, {pipeline_mode = #tpu.pipeline_mode<synchronous>, transform_indices = @transform_5, window_bounds = array<i64: 1, 32>}, {pipeline_mode = #tpu.pipeline_mode<synchronous>, transform_indices = @transform_6, window_bounds = array<i64: 1, 32>}, {pipeline_mode = #tpu.pipeline_mode<synchronous>, transform_indices = @transform_7, window_bounds = array<i64: 32, 64>}, {pipeline_mode = #tpu.pipeline_mode<synchronous>, transform_indices = @transform_8, window_bounds = array<i64: 1, 64>}, {pipeline_mode = #tpu.pipeline_mode<synchronous>, transform_indices = @transform_9, window_bounds = array<i64: 64, 32>}, {pipeline_mode = #tpu.pipeline_mode<synchronous>, transform_indices = @transform_10, window_bounds = array<i64: 1, 32>}, {pipeline_mode = #tpu.pipeline_mode<synchronous>, transform_indices = @transform_11, window_bounds = array<i64: 1, 32>}, {pipeline_mode = #tpu.pipeline_mode<synchronous>, transform_indices = @transform_12, window_bounds = array<i64: 1, 32>}, {transform_indices = @transform_13, window_bounds = array<i64: 1, 8, 32>}, {transform_indices = @transform_14, window_bounds = array<i64: 1, 4, 8, 8>}]} {
    %c0 = arith.constant 0 : index
    %c0_0 = arith.constant 0 : index
    %c0_1 = arith.constant 0 : index
    %0 = vector.load %arg1[%c0, %c0_0, %c0_1] : memref<1x8x32xf32, #tpu.memory_space<vmem>>, vector<1x8x32xf32>
    %1 = vector.shape_cast %0 : vector<1x8x32xf32> to vector<8x32xf32>
    %2 = arith.truncf %1 : vector<8x32xf32> to vector<8x32xbf16>
    %c0_2 = arith.constant 0 : index
    %c0_3 = arith.constant 0 : index
    %3 = vector.load %arg2[%c0_2, %c0_3] : memref<32x96xbf16, #tpu.memory_space<vmem>>, vector<32x96xbf16>
    %cst = arith.constant dense<0.000000e+00> : vector<8x96xf32>
    %4 = tpu.matmul %2, %3, %cst {dimension_numbers = #tpu.dot_dimension_numbers<[1], [0], [0], [1], [0, 0, 1, 1], [], []>} : vector<8x32xbf16>, vector<32x96xbf16>, vector<8x96xf32> -> vector<8x96xf32>
    %c0_4 = arith.constant 0 : index
    %c0_5 = arith.constant 0 : index
    %5 = vector.load %arg3[%c0_4, %c0_5] : memref<1x96xf32, #tpu.memory_space<vmem>>, vector<1x96xf32>
    %6 = vector.broadcast %5 : vector<1x96xf32> to vector<8x96xf32>
    %7 = arith.addf %4, %6 : vector<8x96xf32>
    %8 = tpu.iota {dimensions = array<i32: 0>} : vector<8x8xi32>
    %9 = tpu.iota {dimensions = array<i32: 1>} : vector<8x8xi32>
    %10 = arith.cmpi sgt, %9, %8 : vector<8x8xi32>
    %cst_6 = arith.constant -1.000000e+30 : f32
    %cst_7 = arith.constant 0.000000e+00 : f32
    %11 = vector.broadcast %cst_6 : f32 to vector<8x8xf32>
    %12 = vector.broadcast %cst_7 : f32 to vector<8x8xf32>
    %13 = arith.select %10, %11, %12 : vector<8x8xi1>, vector<8x8xf32>
    %14 = vector.shape_cast %13 : vector<8x8xf32> to vector<1x8x8xf32>
    %15 = vector.extract_strided_slice %7 {offsets = [0, 0], sizes = [8, 8], strides = [1, 1]} : vector<8x96xf32> to vector<8x8xf32>
    %16 = vector.shape_cast %15 : vector<8x8xf32> to vector<1x8x8xf32>
    %17 = vector.extract_strided_slice %7 {offsets = [0, 32], sizes = [8, 8], strides = [1, 1]} : vector<8x96xf32> to vector<8x8xf32>
    %18 = vector.shape_cast %17 : vector<8x8xf32> to vector<1x8x8xf32>
    %19 = vector.extract_strided_slice %7 {offsets = [0, 64], sizes = [8, 8], strides = [1, 1]} : vector<8x96xf32> to vector<8x8xf32>
    %20 = vector.shape_cast %19 : vector<8x8xf32> to vector<1x8x8xf32>
    "tpu.trace_start"() <{level = 10 : i32, message = "bqd,bkd->bqk"}> : () -> ()
    %cst_8 = arith.constant dense<0.000000e+00> : vector<1x8x8xf32>
    %21 = tpu.matmul %16, %18, %cst_8 {dimension_numbers = #tpu.dot_dimension_numbers<[2], [2], [1], [1], [0, 0, 0, 1, 1, 1], [0], [0]>} : vector<1x8x8xf32>, vector<1x8x8xf32>, vector<1x8x8xf32> -> vector<1x8x8xf32>
    "tpu.trace_stop"() : () -> ()
    %cst_9 = arith.constant 0.353553385 : f32
    %22 = vector.broadcast %cst_9 : f32 to vector<1x8x8xf32>
    %23 = arith.mulf %21, %22 : vector<1x8x8xf32>
    %24 = arith.addf %23, %14 : vector<1x8x8xf32>
    %cst_10 = arith.constant dense<0xFF800000> : vector<1x8xf32>
    %25 = vector.multi_reduction <maximumf>, %24, %cst_10 [2] : vector<1x8x8xf32> to vector<1x8xf32>
    %26 = vector.shape_cast %25 : vector<1x8xf32> to vector<1x8x1xf32>
    %27 = vector.broadcast %26 : vector<1x8x1xf32> to vector<1x8x8xf32>
    %28 = arith.subf %24, %27 : vector<1x8x8xf32>
    %29 = math.exp %28 : vector<1x8x8xf32>
    %cst_11 = arith.constant dense<0.000000e+00> : vector<1x8xf32>
    %30 = vector.multi_reduction <add>, %29, %cst_11 [2] : vector<1x8x8xf32> to vector<1x8xf32>
    %31 = vector.shape_cast %30 : vector<1x8xf32> to vector<1x8x1xf32>
    %32 = tpu.reciprocal %31 {approx = true} : vector<1x8x1xf32> -> vector<1x8x1xf32>
    %33 = vector.broadcast %32 : vector<1x8x1xf32> to vector<1x8x8xf32>
    %34 = arith.mulf %29, %33 : vector<1x8x8xf32>
    %35 = arith.truncf %34 : vector<1x8x8xf32> to vector<1x8x8xbf16>
    %c0_12 = arith.constant 0 : index
    %c0_13 = arith.constant 0 : index
    %c0_14 = arith.constant 0 : index
    %c0_15 = arith.constant 0 : index
    %36 = vector.load %arg15[%c0_12, %c0_13, %c0_14, %c0_15] : memref<1x4x8x8xbf16, #tpu.memory_space<vmem>>, vector<1x1x8x8xbf16>
    %37 = vector.shape_cast %36 : vector<1x1x8x8xbf16> to vector<1x8x8xbf16>
    %38 = vector.shape_cast %35 : vector<1x8x8xbf16> to vector<1x1x8x8xbf16>
    tpu.vector_store %arg15[%c0_12, %c0_13, %c0_14, %c0_15], %38 {strides = array<i32>} : memref<1x4x8x8xbf16, #tpu.memory_space<vmem>>, vector<1x1x8x8xbf16>,
    "tpu.trace_start"() <{level = 10 : i32, message = "bqk,bkd->bqd"}> : () -> ()
    %cst_16 = arith.constant dense<0.000000e+00> : vector<1x8x8xf32>
    %39 = tpu.matmul %34, %20, %cst_16 {dimension_numbers = #tpu.dot_dimension_numbers<[2], [1], [1], [2], [0, 0, 0, 1, 1, 2], [0], [0]>} : vector<1x8x8xf32>, vector<1x8x8xf32>, vector<1x8x8xf32> -> vector<1x8x8xf32>
    "tpu.trace_stop"() : () -> ()
    %40 = vector.shape_cast %39 : vector<1x8x8xf32> to vector<8x8xf32>
    %c0_17 = arith.constant 0 : index
    %c0_18 = arith.constant 0 : index
    %41 = vector.load %arg16[%c0_17, %c0_18] : memref<8x32xf32, #tpu.memory_space<vmem>>, vector<8x8xf32>
    tpu.vector_store %arg16[%c0_17, %c0_18], %40 {strides = array<i32>} : memref<8x32xf32, #tpu.memory_space<vmem>>, vector<8x8xf32>,
    %42 = vector.extract_strided_slice %7 {offsets = [0, 8], sizes = [8, 8], strides = [1, 1]} : vector<8x96xf32> to vector<8x8xf32>
    %43 = vector.shape_cast %42 : vector<8x8xf32> to vector<1x8x8xf32>
    %44 = vector.extract_strided_slice %7 {offsets = [0, 40], sizes = [8, 8], strides = [1, 1]} : vector<8x96xf32> to vector<8x8xf32>
    %45 = vector.shape_cast %44 : vector<8x8xf32> to vector<1x8x8xf32>
    %46 = vector.extract_strided_slice %7 {offsets = [0, 72], sizes = [8, 8], strides = [1, 1]} : vector<8x96xf32> to vector<8x8xf32>
    %47 = vector.shape_cast %46 : vector<8x8xf32> to vector<1x8x8xf32>
    "tpu.trace_start"() <{level = 10 : i32, message = "bqd,bkd->bqk"}> : () -> ()
    %cst_19 = arith.constant dense<0.000000e+00> : vector<1x8x8xf32>
    %48 = tpu.matmul %43, %45, %cst_19 {dimension_numbers = #tpu.dot_dimension_numbers<[2], [2], [1], [1], [0, 0, 0, 1, 1, 1], [0], [0]>} : vector<1x8x8xf32>, vector<1x8x8xf32>, vector<1x8x8xf32> -> vector<1x8x8xf32>
    "tpu.trace_stop"() : () -> ()
    %cst_20 = arith.constant 0.353553385 : f32
    %49 = vector.broadcast %cst_20 : f32 to vector<1x8x8xf32>
    %50 = arith.mulf %48, %49 : vector<1x8x8xf32>
    %51 = arith.addf %50, %14 : vector<1x8x8xf32>
    %cst_21 = arith.constant dense<0xFF800000> : vector<1x8xf32>
    %52 = vector.multi_reduction <maximumf>, %51, %cst_21 [2] : vector<1x8x8xf32> to vector<1x8xf32>
    %53 = vector.shape_cast %52 : vector<1x8xf32> to vector<1x8x1xf32>
    %54 = vector.broadcast %53 : vector<1x8x1xf32> to vector<1x8x8xf32>
    %55 = arith.subf %51, %54 : vector<1x8x8xf32>
    %56 = math.exp %55 : vector<1x8x8xf32>
    %cst_22 = arith.constant dense<0.000000e+00> : vector<1x8xf32>
    %57 = vector.multi_reduction <add>, %56, %cst_22 [2] : vector<1x8x8xf32> to vector<1x8xf32>
    %58 = vector.shape_cast %57 : vector<1x8xf32> to vector<1x8x1xf32>
    %59 = tpu.reciprocal %58 {approx = true} : vector<1x8x1xf32> -> vector<1x8x1xf32>
    %60 = vector.broadcast %59 : vector<1x8x1xf32> to vector<1x8x8xf32>
    %61 = arith.mulf %56, %60 : vector<1x8x8xf32>
    %62 = arith.truncf %61 : vector<1x8x8xf32> to vector<1x8x8xbf16>
    %c0_23 = arith.constant 0 : index
    %c1 = arith.constant 1 : index
    %c0_24 = arith.constant 0 : index
    %c0_25 = arith.constant 0 : index
    %63 = vector.load %arg15[%c0_23, %c1, %c0_24, %c0_25] : memref<1x4x8x8xbf16, #tpu.memory_space<vmem>>, vector<1x1x8x8xbf16>
    %64 = vector.shape_cast %63 : vector<1x1x8x8xbf16> to vector<1x8x8xbf16>
    %65 = vector.shape_cast %62 : vector<1x8x8xbf16> to vector<1x1x8x8xbf16>
    tpu.vector_store %arg15[%c0_23, %c1, %c0_24, %c0_25], %65 {strides = array<i32>} : memref<1x4x8x8xbf16, #tpu.memory_space<vmem>>, vector<1x1x8x8xbf16>,
    "tpu.trace_start"() <{level = 10 : i32, message = "bqk,bkd->bqd"}> : () -> ()
    %cst_26 = arith.constant dense<0.000000e+00> : vector<1x8x8xf32>
    %66 = tpu.matmul %61, %47, %cst_26 {dimension_numbers = #tpu.dot_dimension_numbers<[2], [1], [1], [2], [0, 0, 0, 1, 1, 2], [0], [0]>} : vector<1x8x8xf32>, vector<1x8x8xf32>, vector<1x8x8xf32> -> vector<1x8x8xf32>
    "tpu.trace_stop"() : () -> ()
    %67 = vector.shape_cast %66 : vector<1x8x8xf32> to vector<8x8xf32>
    %c0_27 = arith.constant 0 : index
    %c8 = arith.constant 8 : index
    %68 = vector.load %arg16[%c0_27, %c8] : memref<8x32xf32, #tpu.memory_space<vmem>>, vector<8x8xf32>
    tpu.vector_store %arg16[%c0_27, %c8], %67 {strides = array<i32>} : memref<8x32xf32, #tpu.memory_space<vmem>>, vector<8x8xf32>,
    %69 = vector.extract_strided_slice %7 {offsets = [0, 16], sizes = [8, 8], strides = [1, 1]} : vector<8x96xf32> to vector<8x8xf32>
    %70 = vector.shape_cast %69 : vector<8x8xf32> to vector<1x8x8xf32>
    %71 = vector.extract_strided_slice %7 {offsets = [0, 48], sizes = [8, 8], strides = [1, 1]} : vector<8x96xf32> to vector<8x8xf32>
    %72 = vector.shape_cast %71 : vector<8x8xf32> to vector<1x8x8xf32>
    %73 = vector.extract_strided_slice %7 {offsets = [0, 80], sizes = [8, 8], strides = [1, 1]} : vector<8x96xf32> to vector<8x8xf32>
    %74 = vector.shape_cast %73 : vector<8x8xf32> to vector<1x8x8xf32>
    "tpu.trace_start"() <{level = 10 : i32, message = "bqd,bkd->bqk"}> : () -> ()
    %cst_28 = arith.constant dense<0.000000e+00> : vector<1x8x8xf32>
    %75 = tpu.matmul %70, %72, %cst_28 {dimension_numbers = #tpu.dot_dimension_numbers<[2], [2], [1], [1], [0, 0, 0, 1, 1, 1], [0], [0]>} : vector<1x8x8xf32>, vector<1x8x8xf32>, vector<1x8x8xf32> -> vector<1x8x8xf32>
    "tpu.trace_stop"() : () -> ()
    %cst_29 = arith.constant 0.353553385 : f32
    %76 = vector.broadcast %cst_29 : f32 to vector<1x8x8xf32>
    %77 = arith.mulf %75, %76 : vector<1x8x8xf32>
    %78 = arith.addf %77, %14 : vector<1x8x8xf32>
    %cst_30 = arith.constant dense<0xFF800000> : vector<1x8xf32>
    %79 = vector.multi_reduction <maximumf>, %78, %cst_30 [2] : vector<1x8x8xf32> to vector<1x8xf32>
    %80 = vector.shape_cast %79 : vector<1x8xf32> to vector<1x8x1xf32>
    %81 = vector.broadcast %80 : vector<1x8x1xf32> to vector<1x8x8xf32>
    %82 = arith.subf %78, %81 : vector<1x8x8xf32>
    %83 = math.exp %82 : vector<1x8x8xf32>
    %cst_31 = arith.constant dense<0.000000e+00> : vector<1x8xf32>
    %84 = vector.multi_reduction <add>, %83, %cst_31 [2] : vector<1x8x8xf32> to vector<1x8xf32>
    %85 = vector.shape_cast %84 : vector<1x8xf32> to vector<1x8x1xf32>
    %86 = tpu.reciprocal %85 {approx = true} : vector<1x8x1xf32> -> vector<1x8x1xf32>
    %87 = vector.broadcast %86 : vector<1x8x1xf32> to vector<1x8x8xf32>
    %88 = arith.mulf %83, %87 : vector<1x8x8xf32>
    %89 = arith.truncf %88 : vector<1x8x8xf32> to vector<1x8x8xbf16>
    %c0_32 = arith.constant 0 : index
    %c2 = arith.constant 2 : index
    %c0_33 = arith.constant 0 : index
    %c0_34 = arith.constant 0 : index
    %90 = vector.load %arg15[%c0_32, %c2, %c0_33, %c0_34] : memref<1x4x8x8xbf16, #tpu.memory_space<vmem>>, vector<1x1x8x8xbf16>
    %91 = vector.shape_cast %90 : vector<1x1x8x8xbf16> to vector<1x8x8xbf16>
    %92 = vector.shape_cast %89 : vector<1x8x8xbf16> to vector<1x1x8x8xbf16>
    tpu.vector_store %arg15[%c0_32, %c2, %c0_33, %c0_34], %92 {strides = array<i32>} : memref<1x4x8x8xbf16, #tpu.memory_space<vmem>>, vector<1x1x8x8xbf16>,
    "tpu.trace_start"() <{level = 10 : i32, message = "bqk,bkd->bqd"}> : () -> ()
    %cst_35 = arith.constant dense<0.000000e+00> : vector<1x8x8xf32>
    %93 = tpu.matmul %88, %74, %cst_35 {dimension_numbers = #tpu.dot_dimension_numbers<[2], [1], [1], [2], [0, 0, 0, 1, 1, 2], [0], [0]>} : vector<1x8x8xf32>, vector<1x8x8xf32>, vector<1x8x8xf32> -> vector<1x8x8xf32>
    "tpu.trace_stop"() : () -> ()
    %94 = vector.shape_cast %93 : vector<1x8x8xf32> to vector<8x8xf32>
    %c0_36 = arith.constant 0 : index
    %c16 = arith.constant 16 : index
    %95 = vector.load %arg16[%c0_36, %c16] : memref<8x32xf32, #tpu.memory_space<vmem>>, vector<8x8xf32>
    tpu.vector_store %arg16[%c0_36, %c16], %94 {strides = array<i32>} : memref<8x32xf32, #tpu.memory_space<vmem>>, vector<8x8xf32>,
    %96 = vector.extract_strided_slice %7 {offsets = [0, 24], sizes = [8, 8], strides = [1, 1]} : vector<8x96xf32> to vector<8x8xf32>
    %97 = vector.shape_cast %96 : vector<8x8xf32> to vector<1x8x8xf32>
    %98 = vector.extract_strided_slice %7 {offsets = [0, 56], sizes = [8, 8], strides = [1, 1]} : vector<8x96xf32> to vector<8x8xf32>
    %99 = vector.shape_cast %98 : vector<8x8xf32> to vector<1x8x8xf32>
    %100 = vector.extract_strided_slice %7 {offsets = [0, 88], sizes = [8, 8], strides = [1, 1]} : vector<8x96xf32> to vector<8x8xf32>
    %101 = vector.shape_cast %100 : vector<8x8xf32> to vector<1x8x8xf32>
    "tpu.trace_start"() <{level = 10 : i32, message = "bqd,bkd->bqk"}> : () -> ()
    %cst_37 = arith.constant dense<0.000000e+00> : vector<1x8x8xf32>
    %102 = tpu.matmul %97, %99, %cst_37 {dimension_numbers = #tpu.dot_dimension_numbers<[2], [2], [1], [1], [0, 0, 0, 1, 1, 1], [0], [0]>} : vector<1x8x8xf32>, vector<1x8x8xf32>, vector<1x8x8xf32> -> vector<1x8x8xf32>
    "tpu.trace_stop"() : () -> ()
    %cst_38 = arith.constant 0.353553385 : f32
    %103 = vector.broadcast %cst_38 : f32 to vector<1x8x8xf32>
    %104 = arith.mulf %102, %103 : vector<1x8x8xf32>
    %105 = arith.addf %104, %14 : vector<1x8x8xf32>
    %cst_39 = arith.constant dense<0xFF800000> : vector<1x8xf32>
    %106 = vector.multi_reduction <maximumf>, %105, %cst_39 [2] : vector<1x8x8xf32> to vector<1x8xf32>
    %107 = vector.shape_cast %106 : vector<1x8xf32> to vector<1x8x1xf32>
    %108 = vector.broadcast %107 : vector<1x8x1xf32> to vector<1x8x8xf32>
    %109 = arith.subf %105, %108 : vector<1x8x8xf32>
    %110 = math.exp %109 : vector<1x8x8xf32>
    %cst_40 = arith.constant dense<0.000000e+00> : vector<1x8xf32>
    %111 = vector.multi_reduction <add>, %110, %cst_40 [2] : vector<1x8x8xf32> to vector<1x8xf32>
    %112 = vector.shape_cast %111 : vector<1x8xf32> to vector<1x8x1xf32>
    %113 = tpu.reciprocal %112 {approx = true} : vector<1x8x1xf32> -> vector<1x8x1xf32>
    %114 = vector.broadcast %113 : vector<1x8x1xf32> to vector<1x8x8xf32>
    %115 = arith.mulf %110, %114 : vector<1x8x8xf32>
    %116 = arith.truncf %115 : vector<1x8x8xf32> to vector<1x8x8xbf16>
    %c0_41 = arith.constant 0 : index
    %c3 = arith.constant 3 : index
    %c0_42 = arith.constant 0 : index
    %c0_43 = arith.constant 0 : index
    %117 = vector.load %arg15[%c0_41, %c3, %c0_42, %c0_43] : memref<1x4x8x8xbf16, #tpu.memory_space<vmem>>, vector<1x1x8x8xbf16>
    %118 = vector.shape_cast %117 : vector<1x1x8x8xbf16> to vector<1x8x8xbf16>
    %119 = vector.shape_cast %116 : vector<1x8x8xbf16> to vector<1x1x8x8xbf16>
    tpu.vector_store %arg15[%c0_41, %c3, %c0_42, %c0_43], %119 {strides = array<i32>} : memref<1x4x8x8xbf16, #tpu.memory_space<vmem>>, vector<1x1x8x8xbf16>,
    "tpu.trace_start"() <{level = 10 : i32, message = "bqk,bkd->bqd"}> : () -> ()
    %cst_44 = arith.constant dense<0.000000e+00> : vector<1x8x8xf32>
    %120 = tpu.matmul %115, %101, %cst_44 {dimension_numbers = #tpu.dot_dimension_numbers<[2], [1], [1], [2], [0, 0, 0, 1, 1, 2], [0], [0]>} : vector<1x8x8xf32>, vector<1x8x8xf32>, vector<1x8x8xf32> -> vector<1x8x8xf32>
    "tpu.trace_stop"() : () -> ()
    %121 = vector.shape_cast %120 : vector<1x8x8xf32> to vector<8x8xf32>
    %c0_45 = arith.constant 0 : index
    %c24 = arith.constant 24 : index
    %122 = vector.load %arg16[%c0_45, %c24] : memref<8x32xf32, #tpu.memory_space<vmem>>, vector<8x8xf32>
    tpu.vector_store %arg16[%c0_45, %c24], %121 {strides = array<i32>} : memref<8x32xf32, #tpu.memory_space<vmem>>, vector<8x8xf32>,
    %c0_46 = arith.constant 0 : index
    %c0_47 = arith.constant 0 : index
    %123 = vector.load %arg16[%c0_46, %c0_47] : memref<8x32xf32, #tpu.memory_space<vmem>>, vector<8x32xf32>
    %124 = arith.truncf %123 : vector<8x32xf32> to vector<8x32xbf16>
    %c0_48 = arith.constant 0 : index
    %c0_49 = arith.constant 0 : index
    %125 = vector.load %arg4[%c0_48, %c0_49] : memref<32x32xbf16, #tpu.memory_space<vmem>>, vector<32x32xbf16>
    %cst_50 = arith.constant dense<0.000000e+00> : vector<8x32xf32>
    %126 = tpu.matmul %124, %125, %cst_50 {dimension_numbers = #tpu.dot_dimension_numbers<[1], [0], [0], [1], [0, 0, 1, 1], [], []>} : vector<8x32xbf16>, vector<32x32xbf16>, vector<8x32xf32> -> vector<8x32xf32>
    %c0_51 = arith.constant 0 : index
    %c0_52 = arith.constant 0 : index
    %127 = vector.load %arg5[%c0_51, %c0_52] : memref<1x32xf32, #tpu.memory_space<vmem>>, vector<1x32xf32>
    %128 = vector.broadcast %127 : vector<1x32xf32> to vector<8x32xf32>
    %129 = arith.addf %126, %128 : vector<8x32xf32>
    %130 = arith.addf %129, %1 : vector<8x32xf32>
    %c0_53 = arith.constant 0 : index
    %c0_54 = arith.constant 0 : index
    %131 = vector.load %arg6[%c0_53, %c0_54] : memref<1x32xf32, #tpu.memory_space<vmem>>, vector<1x32xf32>
    %c0_55 = arith.constant 0 : index
    %c0_56 = arith.constant 0 : index
    %132 = vector.load %arg7[%c0_55, %c0_56] : memref<1x32xf32, #tpu.memory_space<vmem>>, vector<1x32xf32>
    %cst_57 = arith.constant dense<0.000000e+00> : vector<8xf32>
    %133 = vector.multi_reduction <add>, %130, %cst_57 [1] : vector<8x32xf32> to vector<8xf32>
    %134 = vector.shape_cast %133 : vector<8xf32> to vector<8x1xf32>
    %cst_58 = arith.constant 3.200000e+01 : f32
    %135 = vector.broadcast %cst_58 : f32 to vector<8x1xf32>
    %136 = arith.divf %134, %135 : vector<8x1xf32>
    %137 = vector.broadcast %136 : vector<8x1xf32> to vector<8x32xf32>
    %138 = arith.subf %130, %137 : vector<8x32xf32>
    %139 = arith.mulf %138, %138 : vector<8x32xf32>
    %cst_59 = arith.constant dense<0.000000e+00> : vector<8xf32>
    %140 = vector.multi_reduction <add>, %139, %cst_59 [1] : vector<8x32xf32> to vector<8xf32>
    %141 = vector.shape_cast %140 : vector<8xf32> to vector<8x1xf32>
    %cst_60 = arith.constant 3.200000e+01 : f32
    %142 = vector.broadcast %cst_60 : f32 to vector<8x1xf32>
    %143 = arith.divf %141, %142 : vector<8x1xf32>
    %144 = vector.broadcast %136 : vector<8x1xf32> to vector<8x32xf32>
    %145 = arith.subf %130, %144 : vector<8x32xf32>
    %cst_61 = arith.constant 9.99999974E-6 : f32
    %146 = vector.broadcast %cst_61 : f32 to vector<8x1xf32>
    %147 = arith.addf %143, %146 : vector<8x1xf32>
    %148 = math.rsqrt %147 : vector<8x1xf32>
    %149 = vector.broadcast %148 : vector<8x1xf32> to vector<8x32xf32>
    %150 = arith.mulf %145, %149 : vector<8x32xf32>
    %151 = vector.broadcast %131 : vector<1x32xf32> to vector<8x32xf32>
    %152 = arith.mulf %150, %151 : vector<8x32xf32>
    %153 = vector.broadcast %132 : vector<1x32xf32> to vector<8x32xf32>
    %154 = arith.addf %152, %153 : vector<8x32xf32>
    %155 = arith.truncf %154 : vector<8x32xf32> to vector<8x32xbf16>
    %c0_62 = arith.constant 0 : index
    %c0_63 = arith.constant 0 : index
    %156 = vector.load %arg8[%c0_62, %c0_63] : memref<32x64xbf16, #tpu.memory_space<vmem>>, vector<32x64xbf16>
    %cst_64 = arith.constant dense<0.000000e+00> : vector<8x64xf32>
    %157 = tpu.matmul %155, %156, %cst_64 {dimension_numbers = #tpu.dot_dimension_numbers<[1], [0], [0], [1], [0, 0, 1, 1], [], []>} : vector<8x32xbf16>, vector<32x64xbf16>, vector<8x64xf32> -> vector<8x64xf32>
    %c0_65 = arith.constant 0 : index
    %c0_66 = arith.constant 0 : index
    %158 = vector.load %arg9[%c0_65, %c0_66] : memref<1x64xf32, #tpu.memory_space<vmem>>, vector<1x64xf32>
    %159 = vector.broadcast %158 : vector<1x64xf32> to vector<8x64xf32>
    %160 = arith.addf %157, %159 : vector<8x64xf32>
    %cst_67 = arith.constant 0.000000e+00 : f32
    %161 = vector.broadcast %cst_67 : f32 to vector<8x64xf32>
    %162 = arith.maximumf %160, %161 : vector<8x64xf32>
    %163 = arith.truncf %162 : vector<8x64xf32> to vector<8x64xbf16>
    %c0_68 = arith.constant 0 : index
    %c0_69 = arith.constant 0 : index
    %164 = vector.load %arg10[%c0_68, %c0_69] : memref<64x32xbf16, #tpu.memory_space<vmem>>, vector<64x32xbf16>
    %cst_70 = arith.constant dense<0.000000e+00> : vector<8x32xf32>
    %165 = tpu.matmul %163, %164, %cst_70 {dimension_numbers = #tpu.dot_dimension_numbers<[1], [0], [0], [1], [0, 0, 1, 1], [], []>} : vector<8x64xbf16>, vector<64x32xbf16>, vector<8x32xf32> -> vector<8x32xf32>
    %c0_71 = arith.constant 0 : index
    %c0_72 = arith.constant 0 : index
    %166 = vector.load %arg11[%c0_71, %c0_72] : memref<1x32xf32, #tpu.memory_space<vmem>>, vector<1x32xf32>
    %167 = vector.broadcast %166 : vector<1x32xf32> to vector<8x32xf32>
    %168 = arith.addf %165, %167 : vector<8x32xf32>
    %169 = arith.addf %168, %154 : vector<8x32xf32>
    %c0_73 = arith.constant 0 : index
    %c0_74 = arith.constant 0 : index
    %170 = vector.load %arg12[%c0_73, %c0_74] : memref<1x32xf32, #tpu.memory_space<vmem>>, vector<1x32xf32>
    %c0_75 = arith.constant 0 : index
    %c0_76 = arith.constant 0 : index
    %171 = vector.load %arg13[%c0_75, %c0_76] : memref<1x32xf32, #tpu.memory_space<vmem>>, vector<1x32xf32>
    %cst_77 = arith.constant dense<0.000000e+00> : vector<8xf32>
    %172 = vector.multi_reduction <add>, %169, %cst_77 [1] : vector<8x32xf32> to vector<8xf32>
    %173 = vector.shape_cast %172 : vector<8xf32> to vector<8x1xf32>
    %cst_78 = arith.constant 3.200000e+01 : f32
    %174 = vector.broadcast %cst_78 : f32 to vector<8x1xf32>
    %175 = arith.divf %173, %174 : vector<8x1xf32>
    %176 = vector.broadcast %175 : vector<8x1xf32> to vector<8x32xf32>
    %177 = arith.subf %169, %176 : vector<8x32xf32>
    %178 = arith.mulf %177, %177 : vector<8x32xf32>
    %cst_79 = arith.constant dense<0.000000e+00> : vector<8xf32>
    %179 = vector.multi_reduction <add>, %178, %cst_79 [1] : vector<8x32xf32> to vector<8xf32>
    %180 = vector.shape_cast %179 : vector<8xf32> to vector<8x1xf32>
    %cst_80 = arith.constant 3.200000e+01 : f32
    %181 = vector.broadcast %cst_80 : f32 to vector<8x1xf32>
    %182 = arith.divf %180, %181 : vector<8x1xf32>
    %183 = vector.broadcast %175 : vector<8x1xf32> to vector<8x32xf32>
    %184 = arith.subf %169, %183 : vector<8x32xf32>
    %cst_81 = arith.constant 9.99999974E-6 : f32
    %185 = vector.broadcast %cst_81 : f32 to vector<8x1xf32>
    %186 = arith.addf %182, %185 : vector<8x1xf32>
    %187 = math.rsqrt %186 : vector<8x1xf32>
    %188 = vector.broadcast %187 : vector<8x1xf32> to vector<8x32xf32>
    %189 = arith.mulf %184, %188 : vector<8x32xf32>
    %190 = vector.broadcast %170 : vector<1x32xf32> to vector<8x32xf32>
    %191 = arith.mulf %189, %190 : vector<8x32xf32>
    %192 = vector.broadcast %171 : vector<1x32xf32> to vector<8x32xf32>
    %193 = arith.addf %191, %192 : vector<8x32xf32>
    %194 = vector.shape_cast %193 : vector<8x32xf32> to vector<1x8x32xf32>
    %c0_82 = arith.constant 0 : index
    %c0_83 = arith.constant 0 : index
    %c0_84 = arith.constant 0 : index
    %195 = vector.load %arg14[%c0_82, %c0_83, %c0_84] : memref<1x8x32xf32, #tpu.memory_space<vmem>>, vector<1x8x32xf32>
    tpu.vector_store %arg14[%c0_82, %c0_83, %c0_84], %194 {strides = array<i32>} : memref<1x8x32xf32, #tpu.memory_space<vmem>>, vector<1x8x32xf32>,
    return
  }
  func.func @transform_0(%arg0: i32) -> (i32, i32, i32) {
    %c0_i32 = arith.constant 0 : i32
    %c0_i32_0 = arith.constant 0 : i32
    %c0_i32_1 = arith.constant 0 : i32
    return %arg0, %c0_i32, %c0_i32_0 : i32, i32, i32
  }
  func.func @transform_1(%arg0: i32) -> (i32, i32) {
    %c0_i32 = arith.constant 0 : i32
    %c0_i32_0 = arith.constant 0 : i32
    %c0_i32_1 = arith.constant 0 : i32
    return %c0_i32, %c0_i32_0 : i32, i32
  }
  func.func @transform_2(%arg0: i32) -> (i32, i32) {
    %c0_i32 = arith.constant 0 : i32
    %c0_i32_0 = arith.constant 0 : i32
    %c0_i32_1 = arith.constant 0 : i32
    return %c0_i32, %c0_i32_0 : i32, i32
  }
  func.func @transform_3(%arg0: i32) -> (i32, i32) {
    %c0_i32 = arith.constant 0 : i32
    %c0_i32_0 = arith.constant 0 : i32
    %c0_i32_1 = arith.constant 0 : i32
    return %c0_i32, %c0_i32_0 : i32, i32
  }
  func.func @transform_4(%arg0: i32) -> (i32, i32) {
    %c0_i32 = arith.constant 0 : i32
    %c0_i32_0 = arith.constant 0 : i32
    %c0_i32_1 = arith.constant 0 : i32
    return %c0_i32, %c0_i32_0 : i32, i32
  }
  func.func @transform_5(%arg0: i32) -> (i32, i32) {
    %c0_i32 = arith.constant 0 : i32
    %c0_i32_0 = arith.constant 0 : i32
    %c0_i32_1 = arith.constant 0 : i32
    return %c0_i32, %c0_i32_0 : i32, i32
  }
  func.func @transform_6(%arg0: i32) -> (i32, i32) {
    %c0_i32 = arith.constant 0 : i32
    %c0_i32_0 = arith.constant 0 : i32
    %c0_i32_1 = arith.constant 0 : i32
    return %c0_i32, %c0_i32_0 : i32, i32
  }
  func.func @transform_7(%arg0: i32) -> (i32, i32) {
    %c0_i32 = arith.constant 0 : i32
    %c0_i32_0 = arith.constant 0 : i32
    %c0_i32_1 = arith.constant 0 : i32
    return %c0_i32, %c0_i32_0 : i32, i32
  }
  func.func @transform_8(%arg0: i32) -> (i32, i32) {
    %c0_i32 = arith.constant 0 : i32
    %c0_i32_0 = arith.constant 0 : i32
    %c0_i32_1 = arith.constant 0 : i32
    return %c0_i32, %c0_i32_0 : i32, i32
  }
  func.func @transform_9(%arg0: i32) -> (i32, i32) {
    %c0_i32 = arith.constant 0 : i32
    %c0_i32_0 = arith.constant 0 : i32
    %c0_i32_1 = arith.constant 0 : i32
    return %c0_i32, %c0_i32_0 : i32, i32
  }
  func.func @transform_10(%arg0: i32) -> (i32, i32) {
    %c0_i32 = arith.constant 0 : i32
    %c0_i32_0 = arith.constant 0 : i32
    %c0_i32_1 = arith.constant 0 : i32
    return %c0_i32, %c0_i32_0 : i32, i32
  }
  func.func @transform_11(%arg0: i32) -> (i32, i32) {
    %c0_i32 = arith.constant 0 : i32
    %c0_i32_0 = arith.constant 0 : i32
    %c0_i32_1 = arith.constant 0 : i32
    return %c0_i32, %c0_i32_0 : i32, i32
  }
  func.func @transform_12(%arg0: i32) -> (i32, i32) {
    %c0_i32 = arith.constant 0 : i32
    %c0_i32_0 = arith.constant 0 : i32
    %c0_i32_1 = arith.constant 0 : i32
    return %c0_i32, %c0_i32_0 : i32, i32
  }
  func.func @transform_13(%arg0: i32) -> (i32, i32, i32) {
    %c0_i32 = arith.constant 0 : i32
    %c0_i32_0 = arith.constant 0 : i32
    %c0_i32_1 = arith.constant 0 : i32
    return %arg0, %c0_i32, %c0_i32_0 : i32, i32, i32
  }
  func.func @transform_14(%arg0: i32) -> (i32, i32, i32, i32) {
    %c0_i32 = arith.constant 0 : i32
    %c0_i32_0 = arith.constant 0 : i32
    %c0_i32_1 = arith.constant 0 : i32
    %c0_i32_2 = arith.constant 0 : i32
    return %arg0, %c0_i32, %c0_i32_0, %c0_i32_1 : i32, i32, i32, i32
  }
}

</mosaic_0001>

<llo_original>
// kernel: tpu_custom_call.1
$region0: #{tpu_custom_call.1}
  #allocation0 [shape = 'u32[]', space=smem, size = 0x4, offset = 0x4, fixed_abs, tag = 'smem constant byte address 0x4 - core index']
  #allocation1 [shape = 'u32[144,128]{1,0:T(1,128)}', space=vmem, size = 0x12000, scoped, tag = 'internal scratch']
  #allocation2 [shape = 'f32[8,32]{1,0:T(8,128)}', space=vmem, size = 0x1000, scoped, tag = 'scratch operand']
  %s0 = inlined_call_operand.vmem [shape: f32[2,8,32], index: 0, kind: input, shape index: {}]
  %s1 = inlined_call_operand.vmem [shape: bf16[32,96], index: 1, kind: input, shape index: {}]
  %s2 = inlined_call_operand.vmem [shape: f32[1,96], index: 2, kind: input, shape index: {}]
  %s3 = inlined_call_operand.vmem [shape: bf16[32,32], index: 3, kind: input, shape index: {}]
  %s4 = inlined_call_operand.vmem [shape: f32[1,32], index: 4, kind: input, shape index: {}]
  %s5 = inlined_call_operand.vmem [shape: f32[1,32], index: 5, kind: input, shape index: {}]
  %s6 = inlined_call_operand.vmem [shape: f32[1,32], index: 6, kind: input, shape index: {}]
  %s7 = inlined_call_operand.hbm [shape: bf16[32,64], index: 7, kind: input, shape index: {}]
  %s8 = inlined_call_operand.vmem [shape: f32[1,64], index: 8, kind: input, shape index: {}]
  %s9 = inlined_call_operand.vmem [shape: bf16[64,32], index: 9, kind: input, shape index: {}]
  %s10 = inlined_call_operand.vmem [shape: f32[1,32], index: 10, kind: input, shape index: {}]
  %s11 = inlined_call_operand.vmem [shape: f32[1,32], index: 11, kind: input, shape index: {}]
  %s12 = inlined_call_operand.vmem [shape: f32[1,32], index: 12, kind: input, shape index: {}]
  %s13 = inlined_call_operand.hbm [shape: f32[2,8,32], index: 13, kind: output, shape index: {0}]
  %s14 = inlined_call_operand.hbm [shape: bf16[2,4,8,8], index: 14, kind: output, shape index: {1}]
  %15 = xla_tuple %s13, %s14
  %s16 = sld [smem:[#allocation0]]
  $region97: #{tpu_custom_call.1} parent=0
    _
  %s18 = ssub.s32 1, %s16
  %s19 = scalar_select 0, %s18, %s16
  $region1: #{tpu_custom_call.1} parent=0
    #allocation3 [shape = 'u8[8192]{0}', space=vmem, size = 0x2000, scoped, tag = 'input window, operand 7, single buffered']
    #allocation4 [shape = 's32[2]{0}', space=sflag, size = 0x8, scoped, tag = 'scoped memory for tpu_custom_call.1']
    #allocation5 [shape = 's32[2]{0}', space=sflag, size = 0x8, scoped, tag = 'scoped memory for tpu_custom_call.1']
    #allocation6 [shape = 'u8[8192]{0}', space=vmem, size = 0x2000, scoped, tag = 'output window, operand 0']
    #allocation7 [shape = 'u8[16384]{0}', space=vmem, size = 0x4000, scoped, tag = 'output window, operand 1']
    #allocation8 [shape = 's32[2]{0}', space=sflag, size = 0x8, scoped, tag = 'scoped memory for tpu_custom_call.1']
    %20 = vsyncpa [#allocation4], 0
    %21 = vsyncpa [#allocation5], 0
    %s22 = scalar_lea.sflag [#allocation5], 1
    %23 = vsyncpa %s22, 0
    %24 = vsyncpa [#allocation8], 0
    %s25 = scalar_lea.sflag [#allocation8], 1
    %26 = vsyncpa %s25, 0
    loop: start=0, step=1, limit=4
    $region2: #{tpu_custom_call.1} parent=1 // loop_pre_header
      _
    $region3: #{tpu_custom_call.1} parent=1 // loop_header
      %s28 = sphi 0, %s32
      %p29 = scmp.ge.s32.totalorder %s28, 4
      %s38 = sphi 0, %s40
      %s41 = sphi 0, %s38
      %s42 = sphi 0, %s41
      %s58 = sphi 0, %s42
      %s62 = sphi 0, %s62
      %s64 = sphi 0, %s62
      %s65 = sphi 0, %s64
      %s79 = sphi 0, %s65
      %s83 = sphi 0, %s83
      %s85 = sphi 0, %s83
      %s86 = sphi 0, %s85
      %s100 = sphi 0, %s86
      %s104 = sphi 0, %s104
      %s106 = sphi 0, %s104
      %s107 = sphi 0, %s106
      %s121 = sphi 0, %s107
      %s125 = sphi 0, %s125
      %s127 = sphi 0, %s125
      %s128 = sphi 0, %s127
      %s142 = sphi 0, %s128
      %s146 = sphi 0, %s146
      %s148 = sphi 0, %s146
      %s149 = sphi 0, %s148
      %s163 = sphi 0, %s149
      %s167 = sphi 0, %s167
      %s169 = sphi 0, %s167
      %s170 = sphi 0, %s169
      %s184 = sphi 0, %s170
      %s188 = sphi 0, %s188
      %s190 = sphi 0, %s188
      %s191 = sphi 0, %s190
      %s205 = sphi 0, %s191
      %s209 = sphi 0, %s209
      %s211 = sphi 0, %s209
      %s212 = sphi 0, %s211
      %s226 = sphi 0, %s212
      %s230 = sphi 0, %s230
      %s232 = sphi 0, %s230
      %s233 = sphi 0, %s232
      %s247 = sphi 0, %s233
      %s251 = sphi 0, %s251
      %s253 = sphi 0, %s251
      %s254 = sphi 0, %s253
      %s268 = sphi 0, %s254
      %s272 = sphi 0, %s272
      %s274 = sphi 0, %s272
      %s275 = sphi 0, %s274
      %s289 = sphi 0, %s275
      %s293 = sphi 0, %s293
      %s295 = sphi 0, %s293
      %s296 = sphi 0, %s295
      %s310 = sphi 0, %s296
      %s316 = sphi 0, %s318
      %s319 = sphi 0, %s316
      %s320 = sphi 0, %s319
      %s336 = sphi 0, %s320
      %s342 = sphi 0, %s344
      %s345 = sphi 0, %s342
      %s346 = sphi 0, %s345
      %s362 = sphi 0, %s346
    $region4: #{tpu_custom_call.1} parent=1 // loop_header_branch
      %31 = sbr.rel (%p29) target = $region8
    $region5: #{tpu_custom_call.1} parent=1 // loop_body
      %s33 = ssub.s32 %s28, 1
      %s34 = ssub.s32 %s28, 2
      %s35 = sadd.s32 %s28, 1
      %s36 = ssub.s32 %s28, %s35
      %p37 = scmp.eq.s32.totalorder %s36, 0
      %s39 = sadd.s32 %s38, 1
      %s40 = scalar_select %p37, %s38, %s39
      %p43 = pneg %p37
      %p44 = scmp.eq.s32.totalorder %s28, 1
      %p45 = por %p43, %p44
      %p46 = scmp.ne.s32.totalorder %s38, %s41
      %p47 = scmp.eq.s32.totalorder %s28, 0
      %p48 = por %p46, %p47
      %p49 = scmp.ne.s32.totalorder %s38, %s41
      %p50 = scmp.eq.s32.totalorder %s33, 1
      %p51 = por %p49, %p50
      %p52 = scmp.ne.s32.totalorder %s41, %s42
      %p53 = scmp.eq.s32.totalorder %s33, 0
      %p54 = por %p52, %p53
      %p55 = scmp.ne.s32.totalorder %s41, %s42
      %p56 = scmp.eq.s32.totalorder %s34, 1
      %p57 = por %p55, %p56
      %p59 = scmp.ne.s32.totalorder %s42, %s58
      %p60 = scmp.eq.s32.totalorder %s34, 0
      %p61 = por %p59, %p60
      %s63 = sadd.s32 %s62, 1
      %p66 = scmp.eq.s32.totalorder %s28, 1
      %p67 = scmp.ne.s32.totalorder %s62, %s64
      %p68 = scmp.eq.s32.totalorder %s28, 0
      %p69 = por %p67, %p68
      %p70 = scmp.ne.s32.totalorder %s62, %s64
      %p71 = scmp.eq.s32.totalorder %s33, 1
      %p72 = por %p70, %p71
      %p73 = scmp.ne.s32.totalorder %s64, %s65
      %p74 = scmp.eq.s32.totalorder %s33, 0
      %p75 = por %p73, %p74
      %p76 = scmp.ne.s32.totalorder %s64, %s65
      %p77 = scmp.eq.s32.totalorder %s34, 1
      %p78 = por %p76, %p77
      %p80 = scmp.ne.s32.totalorder %s65, %s79
      %p81 = scmp.eq.s32.totalorder %s34, 0
      %p82 = por %p80, %p81
      %s84 = sadd.s32 %s83, 1
      %p87 = scmp.eq.s32.totalorder %s28, 1
      %p88 = scmp.ne.s32.totalorder %s83, %s85
      %p89 = scmp.eq.s32.totalorder %s28, 0
      %p90 = por %p88, %p89
      %p91 = scmp.ne.s32.totalorder %s83, %s85
      %p92 = scmp.eq.s32.totalorder %s33, 1
      %p93 = por %p91, %p92
      %p94 = scmp.ne.s32.totalorder %s85, %s86
      %p95 = scmp.eq.s32.totalorder %s33, 0
      %p96 = por %p94, %p95
      %p97 = scmp.ne.s32.totalorder %s85, %s86
      %p98 = scmp.eq.s32.totalorder %s34, 1
      %p99 = por %p97, %p98
      %p101 = scmp.ne.s32.totalorder %s86, %s100
      %p102 = scmp.eq.s32.totalorder %s34, 0
      %p103 = por %p101, %p102
      %s105 = sadd.s32 %s104, 1
      %p108 = scmp.eq.s32.totalorder %s28, 1
      %p109 = scmp.ne.s32.totalorder %s104, %s106
      %p110 = scmp.eq.s32.totalorder %s28, 0
      %p111 = por %p109, %p110
      %p112 = scmp.ne.s32.totalorder %s104, %s106
      %p113 = scmp.eq.s32.totalorder %s33, 1
      %p114 = por %p112, %p113
      %p115 = scmp.ne.s32.totalorder %s106, %s107
      %p116 = scmp.eq.s32.totalorder %s33, 0
      %p117 = por %p115, %p116
      %p118 = scmp.ne.s32.totalorder %s106, %s107
      %p119 = scmp.eq.s32.totalorder %s34, 1
      %p120 = por %p118, %p119
      %p122 = scmp.ne.s32.totalorder %s107, %s121
      %p123 = scmp.eq.s32.totalorder %s34, 0
      %p124 = por %p122, %p123
      %s126 = sadd.s32 %s125, 1
      %p129 = scmp.eq.s32.totalorder %s28, 1
      %p130 = scmp.ne.s32.totalorder %s125, %s127
      %p131 = scmp.eq.s32.totalorder %s28, 0
      %p132 = por %p130, %p131
      %p133 = scmp.ne.s32.totalorder %s125, %s127
      %p134 = scmp.eq.s32.totalorder %s33, 1
      %p135 = por %p133, %p134
      %p136 = scmp.ne.s32.totalorder %s127, %s128
      %p137 = scmp.eq.s32.totalorder %s33, 0
      %p138 = por %p136, %p137
      %p139 = scmp.ne.s32.totalorder %s127, %s128
      %p140 = scmp.eq.s32.totalorder %s34, 1
      %p141 = por %p139, %p140
      %p143 = scmp.ne.s32.totalorder %s128, %s142
      %p144 = scmp.eq.s32.totalorder %s34, 0
      %p145 = por %p143, %p144
      %s147 = sadd.s32 %s146, 1
      %p150 = scmp.eq.s32.totalorder %s28, 1
      %p151 = scmp.ne.s32.totalorder %s146, %s148
      %p152 = scmp.eq.s32.totalorder %s28, 0
      %p153 = por %p151, %p152
      %p154 = scmp.ne.s32.totalorder %s146, %s148
      %p155 = scmp.eq.s32.totalorder %s33, 1
      %p156 = por %p154, %p155
      %p157 = scmp.ne.s32.totalorder %s148, %s149
      %p158 = scmp.eq.s32.totalorder %s33, 0
      %p159 = por %p157, %p158
      %p160 = scmp.ne.s32.totalorder %s148, %s149
      %p161 = scmp.eq.s32.totalorder %s34, 1
      %p162 = por %p160, %p161
      %p164 = scmp.ne.s32.totalorder %s149, %s163
      %p165 = scmp.eq.s32.totalorder %s34, 0
      %p166 = por %p164, %p165
      %s168 = sadd.s32 %s167, 1
      %p171 = scmp.eq.s32.totalorder %s28, 1
      %p172 = scmp.ne.s32.totalorder %s167, %s169
      %p173 = scmp.eq.s32.totalorder %s28, 0
      %p174 = por %p172, %p173
      %p175 = scmp.ne.s32.totalorder %s167, %s169
      %p176 = scmp.eq.s32.totalorder %s33, 1
      %p177 = por %p175, %p176
      %p178 = scmp.ne.s32.totalorder %s169, %s170
      %p179 = scmp.eq.s32.totalorder %s33, 0
      %p180 = por %p178, %p179
      %p181 = scmp.ne.s32.totalorder %s169, %s170
      %p182 = scmp.eq.s32.totalorder %s34, 1
      %p183 = por %p181, %p182
      %p185 = scmp.ne.s32.totalorder %s170, %s184
      %p186 = scmp.eq.s32.totalorder %s34, 0
      %p187 = por %p185, %p186
      %s189 = sadd.s32 %s188, 1
      %p192 = scmp.eq.s32.totalorder %s28, 1
      %p193 = scmp.ne.s32.totalorder %s188, %s190
      %p194 = scmp.eq.s32.totalorder %s28, 0
      %p195 = por %p193, %p194
      %p196 = scmp.ne.s32.totalorder %s188, %s190
      %p197 = scmp.eq.s32.totalorder %s33, 1
      %p198 = por %p196, %p197
      %p199 = scmp.ne.s32.totalorder %s190, %s191
      %p200 = scmp.eq.s32.totalorder %s33, 0
      %p201 = por %p199, %p200
      %p202 = scmp.ne.s32.totalorder %s190, %s191
      %p203 = scmp.eq.s32.totalorder %s34, 1
      %p204 = por %p202, %p203
      %p206 = scmp.ne.s32.totalorder %s191, %s205
      %p207 = scmp.eq.s32.totalorder %s34, 0
      %p208 = por %p206, %p207
      %s210 = sadd.s32 %s209, 1
      %p213 = scmp.eq.s32.totalorder %s28, 1
      %p214 = scmp.ne.s32.totalorder %s209, %s211
      %p215 = scmp.eq.s32.totalorder %s28, 0
      %p216 = por %p214, %p215
      %p217 = scmp.ne.s32.totalorder %s209, %s211
      %p218 = scmp.eq.s32.totalorder %s33, 1
      %p219 = por %p217, %p218
      %p220 = scmp.ne.s32.totalorder %s211, %s212
      %p221 = scmp.eq.s32.totalorder %s33, 0
      %p222 = por %p220, %p221
      %p223 = scmp.ne.s32.totalorder %s211, %s212
      %p224 = scmp.eq.s32.totalorder %s34, 1
      %p225 = por %p223, %p224
      %p227 = scmp.ne.s32.totalorder %s212, %s226
      %p228 = scmp.eq.s32.totalorder %s34, 0
      %p229 = por %p227, %p228
      %s231 = sadd.s32 %s230, 1
      %p234 = scmp.eq.s32.totalorder %s28, 1
      %p235 = scmp.ne.s32.totalorder %s230, %s232
      %p236 = scmp.eq.s32.totalorder %s28, 0
      %p237 = por %p235, %p236
      %p238 = scmp.ne.s32.totalorder %s230, %s232
      %p239 = scmp.eq.s32.totalorder %s33, 1
      %p240 = por %p238, %p239
      %p241 = scmp.ne.s32.totalorder %s232, %s233
      %p242 = scmp.eq.s32.totalorder %s33, 0
      %p243 = por %p241, %p242
      %p244 = scmp.ne.s32.totalorder %s232, %s233
      %p245 = scmp.eq.s32.totalorder %s34, 1
      %p246 = por %p244, %p245
      %p248 = scmp.ne.s32.totalorder %s233, %s247
      %p249 = scmp.eq.s32.totalorder %s34, 0
      %p250 = por %p248, %p249
      %s252 = sadd.s32 %s251, 1
      %p255 = scmp.eq.s32.totalorder %s28, 1
      %p256 = scmp.ne.s32.totalorder %s251, %s253
      %p257 = scmp.eq.s32.totalorder %s28, 0
      %p258 = por %p256, %p257
      %p259 = scmp.ne.s32.totalorder %s251, %s253
      %p260 = scmp.eq.s32.totalorder %s33, 1
      %p261 = por %p259, %p260
      %p262 = scmp.ne.s32.totalorder %s253, %s254
      %p263 = scmp.eq.s32.totalorder %s33, 0
      %p264 = por %p262, %p263
      %p265 = scmp.ne.s32.totalorder %s253, %s254
      %p266 = scmp.eq.s32.totalorder %s34, 1
      %p267 = por %p265, %p266
      %p269 = scmp.ne.s32.totalorder %s254, %s268
      %p270 = scmp.eq.s32.totalorder %s34, 0
      %p271 = por %p269, %p270
      %s273 = sadd.s32 %s272, 1
      %p276 = scmp.eq.s32.totalorder %s28, 1
      %p277 = scmp.ne.s32.totalorder %s272, %s274
      %p278 = scmp.eq.s32.totalorder %s28, 0
      %p279 = por %p277, %p278
      %p280 = scmp.ne.s32.totalorder %s272, %s274
      %p281 = scmp.eq.s32.totalorder %s33, 1
      %p282 = por %p280, %p281
      %p283 = scmp.ne.s32.totalorder %s274, %s275
      %p284 = scmp.eq.s32.totalorder %s33, 0
      %p285 = por %p283, %p284
      %p286 = scmp.ne.s32.totalorder %s274, %s275
      %p287 = scmp.eq.s32.totalorder %s34, 1
      %p288 = por %p286, %p287
      %p290 = scmp.ne.s32.totalorder %s275, %s289
      %p291 = scmp.eq.s32.totalorder %s34, 0
      %p292 = por %p290, %p291
      %s294 = sadd.s32 %s293, 1
      %p297 = scmp.eq.s32.totalorder %s28, 1
      %p298 = scmp.ne.s32.totalorder %s293, %s295
      %p299 = scmp.eq.s32.totalorder %s28, 0
      %p300 = por %p298, %p299
      %p301 = scmp.ne.s32.totalorder %s293, %s295
      %p302 = scmp.eq.s32.totalorder %s33, 1
      %p303 = por %p301, %p302
      %p304 = scmp.ne.s32.totalorder %s295, %s296
      %p305 = scmp.eq.s32.totalorder %s33, 0
      %p306 = por %p304, %p305
      %p307 = scmp.ne.s32.totalorder %s295, %s296
      %p308 = scmp.eq.s32.totalorder %s34, 1
      %p309 = por %p307, %p308
      %p311 = scmp.ne.s32.totalorder %s296, %s310
      %p312 = scmp.eq.s32.totalorder %s34, 0
      %p313 = por %p311, %p312
      %s314 = ssub.s32 %s28, %s35
      %p315 = scmp.eq.s32.totalorder %s314, 0
      %s317 = sadd.s32 %s316, 1
      %s318 = scalar_select %p315, %s316, %s317
      %p321 = pneg %p315
      %p322 = scmp.eq.s32.totalorder %s28, 1
      %p323 = por %p321, %p322
      %p324 = scmp.ne.s32.totalorder %s316, %s319
      %p325 = scmp.eq.s32.totalorder %s28, 0
      %p326 = por %p324, %p325
      %p327 = scmp.ne.s32.totalorder %s316, %s319
      %p328 = scmp.eq.s32.totalorder %s33, 1
      %p329 = por %p327, %p328
      %p330 = scmp.ne.s32.totalorder %s319, %s320
      %p331 = scmp.eq.s32.totalorder %s33, 0
      %p332 = por %p330, %p331
      %p333 = scmp.ne.s32.totalorder %s319, %s320
      %p334 = scmp.eq.s32.totalorder %s34, 1
      %p335 = por %p333, %p334
      %p337 = scmp.ne.s32.totalorder %s320, %s336
      %p338 = scmp.eq.s32.totalorder %s34, 0
      %p339 = por %p337, %p338
      %s340 = ssub.s32 %s28, %s35
      %p341 = scmp.eq.s32.totalorder %s340, 0
      %s343 = sadd.s32 %s342, 1
      %s344 = scalar_select %p341, %s342, %s343
      %p347 = pneg %p341
      %p348 = scmp.eq.s32.totalorder %s28, 1
      %p349 = por %p347, %p348
      %p350 = scmp.ne.s32.totalorder %s342, %s345
      %p351 = scmp.eq.s32.totalorder %s28, 0
      %p352 = por %p350, %p351
      %p353 = scmp.ne.s32.totalorder %s342, %s345
      %p354 = scmp.eq.s32.totalorder %s33, 1
      %p355 = por %p353, %p354
      %p356 = scmp.ne.s32.totalorder %s345, %s346
      %p357 = scmp.eq.s32.totalorder %s33, 0
      %p358 = por %p356, %p357
      %p359 = scmp.ne.s32.totalorder %s345, %s346
      %p360 = scmp.eq.s32.totalorder %s34, 1
      %p361 = por %p359, %p360
      %p363 = scmp.ne.s32.totalorder %s346, %s362
      %p364 = scmp.eq.s32.totalorder %s34, 0
      %p365 = por %p363, %p364
      %p366 = scmp.le.s32.totalorder 1, %s28
      %p367 = scmp.lt.s32.totalorder %s28, 3
      %p368 = pnand %p366, %p367
      %p369 = pneg %p368
      // Predicated region
      $region9: #{tpu_custom_call.1} parent=5 // pred_check
        _
      $region10: #{tpu_custom_call.1} parent=5 // pred_check_branch
        %371 = sbr.rel (%p368) target = $region12
      $region11: #{tpu_custom_call.1} parent=5 // pred_region
        %s372 = ssub.s32 %s28, 1
        // Predicated region
        $region13: #{tpu_custom_call.1} parent=11 // pred_check
          %p373 = pneg %p75
        $region14: #{tpu_custom_call.1} parent=11 // pred_check_branch
          %375 = sbr.rel (%p373) target = $region16
        $region15: #{tpu_custom_call.1} parent=11 // pred_region
          _
        $region16: #{tpu_custom_call.1} parent=11 // pred_fallthru
          _
        // Predicated region
        $region17: #{tpu_custom_call.1} parent=11 // pred_check
          %p376 = pneg %p96
        $region18: #{tpu_custom_call.1} parent=11 // pred_check_branch
          %378 = sbr.rel (%p376) target = $region20
        $region19: #{tpu_custom_call.1} parent=11 // pred_region
          _
        $region20: #{tpu_custom_call.1} parent=11 // pred_fallthru
          _
        // Predicated region
        $region21: #{tpu_custom_call.1} parent=11 // pred_check
          %p379 = pneg %p117
        $region22: #{tpu_custom_call.1} parent=11 // pred_check_branch
          %381 = sbr.rel (%p379) target = $region24
        $region23: #{tpu_custom_call.1} parent=11 // pred_region
          _
        $region24: #{tpu_custom_call.1} parent=11 // pred_fallthru
          _
        // Predicated region
        $region25: #{tpu_custom_call.1} parent=11 // pred_check
          %p382 = pneg %p138
        $region26: #{tpu_custom_call.1} parent=11 // pred_check_branch
          %384 = sbr.rel (%p382) target = $region28
        $region27: #{tpu_custom_call.1} parent=11 // pred_region
          _
        $region28: #{tpu_custom_call.1} parent=11 // pred_fallthru
          _
        // Predicated region
        $region29: #{tpu_custom_call.1} parent=11 // pred_check
          %p385 = pneg %p159
        $region30: #{tpu_custom_call.1} parent=11 // pred_check_branch
          %387 = sbr.rel (%p385) target = $region32
        $region31: #{tpu_custom_call.1} parent=11 // pred_region
          _
        $region32: #{tpu_custom_call.1} parent=11 // pred_fallthru
          _
        // Predicated region
        $region33: #{tpu_custom_call.1} parent=11 // pred_check
          %p388 = pneg %p180
        $region34: #{tpu_custom_call.1} parent=11 // pred_check_branch
          %390 = sbr.rel (%p388) target = $region36
        $region35: #{tpu_custom_call.1} parent=11 // pred_region
          _
        $region36: #{tpu_custom_call.1} parent=11 // pred_fallthru
          _
        // Predicated region
        $region37: #{tpu_custom_call.1} parent=11 // pred_check
          %p391 = pneg %p201
        $region38: #{tpu_custom_call.1} parent=11 // pred_check_branch
          %393 = sbr.rel (%p391) target = $region40
        $region39: #{tpu_custom_call.1} parent=11 // pred_region
          %s395 = ssub.s32 256, 256
          %396 = vsyncadd [#allocation4], %s395
          %s397 = sshll.u32 [#allocation3], 4
          %s398 = int_to_ptr.vmem [resolvable:$true] %s397
          %403 = dma.hbm_to_vmem [thread:$0]  %s7, 256, %s398, [#allocation4], 64, 64, 4
        $region40: #{tpu_custom_call.1} parent=11 // pred_fallthru
          _
        // Predicated region
        $region41: #{tpu_custom_call.1} parent=11 // pred_check
          %p404 = pneg %p222
        $region42: #{tpu_custom_call.1} parent=11 // pred_check_branch
          %406 = sbr.rel (%p404) target = $region44
        $region43: #{tpu_custom_call.1} parent=11 // pred_region
          _
        $region44: #{tpu_custom_call.1} parent=11 // pred_fallthru
          _
        // Predicated region
        $region45: #{tpu_custom_call.1} parent=11 // pred_check
          %p407 = pneg %p243
        $region46: #{tpu_custom_call.1} parent=11 // pred_check_branch
          %409 = sbr.rel (%p407) target = $region48
        $region47: #{tpu_custom_call.1} parent=11 // pred_region
          _
        $region48: #{tpu_custom_call.1} parent=11 // pred_fallthru
          _
        // Predicated region
        $region49: #{tpu_custom_call.1} parent=11 // pred_check
          %p410 = pneg %p264
        $region50: #{tpu_custom_call.1} parent=11 // pred_check_branch
          %412 = sbr.rel (%p410) target = $region52
        $region51: #{tpu_custom_call.1} parent=11 // pred_region
          _
        $region52: #{tpu_custom_call.1} parent=11 // pred_fallthru
          _
        // Predicated region
        $region53: #{tpu_custom_call.1} parent=11 // pred_check
          %p413 = pneg %p285
        $region54: #{tpu_custom_call.1} parent=11 // pred_check_branch
          %415 = sbr.rel (%p413) target = $region56
        $region55: #{tpu_custom_call.1} parent=11 // pred_region
          _
        $region56: #{tpu_custom_call.1} parent=11 // pred_fallthru
          _
        // Predicated region
        $region57: #{tpu_custom_call.1} parent=11 // pred_check
          %p416 = pneg %p306
        $region58: #{tpu_custom_call.1} parent=11 // pred_check_branch
          %418 = sbr.rel (%p416) target = $region60
        $region59: #{tpu_custom_call.1} parent=11 // pred_region
          _
        $region60: #{tpu_custom_call.1} parent=11 // pred_fallthru
          _
      $region12: #{tpu_custom_call.1} parent=5 // pred_fallthru
        _
      %p419 = scmp.lt.s32.totalorder %s28, 2
      // Predicated region
      $region61: #{tpu_custom_call.1} parent=5 // pred_check
        %p420 = pneg %p419
      $region62: #{tpu_custom_call.1} parent=5 // pred_check_branch
        %422 = sbr.rel (%p420) target = $region64
      $region63: #{tpu_custom_call.1} parent=5 // pred_region
        // Predicated region
        $region65: #{tpu_custom_call.1} parent=63 // pred_check
          %p423 = pneg %p48
        $region66: #{tpu_custom_call.1} parent=63 // pred_check_branch
          %425 = sbr.rel (%p423) target = $region68
        $region67: #{tpu_custom_call.1} parent=63 // pred_region
          %p426 = scmp.lt.s32.totalorder %s28, 1
          %s427 = scalar_select %p426, %s28, 1
          %s428 = smul.addr %s427, 8
          %s429 = scalar_lea.vmem %s0, %s428
        $region68: #{tpu_custom_call.1} parent=63 // pred_fallthru
          _
      $region64: #{tpu_custom_call.1} parent=5 // pred_fallthru
        _
      %p430 = scmp.le.s32.totalorder 1, %s28
      %p431 = scmp.lt.s32.totalorder %s28, 3
      %p432 = pnand %p430, %p431
      %p433 = pneg %p432
      // Predicated region
      $region69: #{tpu_custom_call.1} parent=5 // pred_check
        _
      $region70: #{tpu_custom_call.1} parent=5 // pred_check_branch
        %435 = sbr.rel (%p432) target = $region72
      $region71: #{tpu_custom_call.1} parent=5 // pred_region
        %s436 = ssub.s32 %s28, 1
        // Predicated region
        $region73: #{tpu_custom_call.1} parent=71 // pred_check
          %p437 = pneg %p201
        $region74: #{tpu_custom_call.1} parent=71 // pred_check_branch
          %439 = sbr.rel (%p437) target = $region76
        $region75: #{tpu_custom_call.1} parent=71 // pred_region
          %440 = dma.done [#allocation4], 256
        $region76: #{tpu_custom_call.1} parent=71 // pred_fallthru
          _
        %p441 = scmp.lt.s32.totalorder %s33, 1
        %s442 = scalar_select %p441, %s33, 1
        %s443 = smul.addr %s442, 8
        %s444 = scalar_lea.vmem %s0, %s443
        %p445 = pneg %p54
        %p446 = pneg %p51
        %p447 = pneg %p75
        %p448 = pneg %p72
        %p449 = pneg %p96
        %p450 = pneg %p93
        %p451 = pneg %p117
        %p452 = pneg %p114
        %p453 = pneg %p138
        %p454 = pneg %p135
        %p455 = pneg %p159
        %p456 = pneg %p156
        %p457 = pneg %p180
        %p458 = pneg %p177
        %p459 = pneg %p201
        %p460 = pneg %p198
        %p461 = pneg %p222
        %p462 = pneg %p219
        %p463 = pneg %p243
        %p464 = pneg %p240
        %p465 = pneg %p264
        %p466 = pneg %p261
        %p467 = pneg %p285
        %p468 = pneg %p282
        %p469 = pneg %p306
        %p470 = pneg %p303
        %p471 = pneg %p332
        %p472 = pneg %p329
        %s473 = sand.u32 %s319, 1
        %s474 = scalar_lea.sflag [#allocation5], %s473
        %s475 = sand.u32 %s319, 1
        %s476 = smul.addr %s475, 8
        %s477 = scalar_lea.vmem [#allocation6], %s476
        %p478 = pneg %p358
        %p479 = pneg %p355
        %s480 = sand.u32 %s345, 1
        %s481 = scalar_lea.sflag [#allocation8], %s480
        %s482 = sand.u32 %s345, 1
        %s483 = smul.addr %s482, 16
        %s484 = scalar_lea.vmem [#allocation7], %s483
        %p485 = scmp.lt.s32.totalorder %s33, 1
        %s486 = scalar_select %p485, %s33, 1
        %s487 = smul.addr %s486, 8
        %s488 = scalar_lea.vmem %s0, %s487
        %v490 = vld [vmem:[%s488] sm:$0xff]
        %v491 = vpack.c.bf16 %v490, %v490
        %v492 = vld [vmem:[%s1] sm:$0xf]
        %v493 = vld [vmem:[%s1 + $0x4] sm:$0xf]
        %v494 = vld [vmem:[%s1 + $0x8] sm:$0xf]
        %v495 = vld [vmem:[%s1 + $0xc] sm:$0xf]
        %v496 = vld [vmem:[%s2] sm:$0x1]
        %v498 = vlaneseq
        %v499 = vshrl.u32 %v498, 7
        %v500 = vsub.s32 0, %v499
        %v501 = vrot.slane %v496, %v500
        %v507 = vunpack.c.l.b16 %v492
        %v508 = vunpack.c.l.b16 %v493
        %v509 = vunpack.c.l.b16 %v494
        %v510 = vunpack.c.l.b16 %v495
        %v511 = vpack.c.b16 %v508, %v507
        %v512 = vpack.c.b16 %v510, %v509
        %vm515 = vcmask 261120
        %v517 = vsel %vm515, %v491, 0
        %519 = vmatprep.subr.bf16.mxu0 0
        %520 = vmatpush1.bf16.msra.mxu0 %v511
        %521 = vmatprep.subr.bf16.mxu0 0
        %522 = vmatpush1.bf16.msra.mxu0 %v512
        %523 = vmatprep.subr.bf16.mxu0 0
        %524 = vmatpush1.bf16.msra.mxu0 0
        %525 = vmatprep.subr.bf16.mxu0 0
        %526 = vmatpush1.bf16.msra.mxu0 0
        %527 = vmatprep.subr.bf16.mxu0 0
        %528 = vmatpush1.bf16.msra.mxu0 0
        %529 = vmatprep.subr.bf16.mxu0 0
        %530 = vmatpush1.bf16.msra.mxu0 0
        %531 = vmatprep.subr.bf16.mxu0 0
        %532 = vmatpush1.bf16.msra.mxu0 0
        %533 = vmatprep.subr.bf16.mxu0 0
        %534 = vmatpush1.bf16.msra.mxu0 0
        %535 = vmatprep.subr.bf16.mxu0 0
        %536 = vmatpush1.bf16.msra.mxu0 0
        %537 = vmatprep.subr.bf16.mxu0 0
        %538 = vmatpush1.bf16.msra.mxu0 0
        %539 = vmatprep.subr.bf16.mxu0 0
        %540 = vmatpush1.bf16.msra.mxu0 0
        %541 = vmatprep.subr.bf16.mxu0 0
        %542 = vmatpush1.bf16.msra.mxu0 0
        %543 = vmatprep.subr.bf16.mxu0 0
        %544 = vmatpush1.bf16.msra.mxu0 0
        %545 = vmatprep.subr.bf16.mxu0 0
        %546 = vmatpush1.bf16.msra.mxu0 0
        %547 = vmatprep.subr.bf16.mxu0 0
        %548 = vmatpush1.bf16.msra.mxu0 0
        %549 = vmatprep.subr.bf16.mxu0 0
        %550 = vmatpush1.bf16.msra.mxu0 0
        %551 = vmatprep.mubr.bf16.mxu0 0
        %552 = vmatmul.mubr.bf16.gmra.mrb[0].mxu0 %v517
        %v553 = vpop.f32.mrb[0].mxu0
        %v554 = vadd.f32 %v501, %v553
        %v555 = vpop.f32.mrb[0].mxu0
        %v556 = vpop.f32.mrb[0].mxu0
        %v557 = vpop.f32.mrb[0].mxu0
        %558 = vdwg.mxu0
        %v559 = vlaneseq
        %v560 = vshrl.u32 %v559, 7
        %v561 = vlaneseq
        %v562 = vand.u32 %v561, 127
        %vm563 = vcmp.gt.s32.totalorder %v562, %v560
        %v564 = vsel %vm563, -1e+30, 0.0
        %566 = vrot.lane.b32.xlu0 %v554, 96
        %v567 = vpop.permute.xlu0 %566
        %vm568 = vcmask 64512
        %v569 = vsel %vm568, %v554, 0
        %v571 = vsel %vm568, %v567, 0
        %573 = vmatprep.subr.mxu0 0.0
        %574 = vmatpush1.xpose.msra.mxu0 %v571
        %575 = vmatprep.subr.mxu0 0.0
        %576 = vmatpush1.xpose.msra.mxu0 0.0
        %577 = vmatprep.subr.mxu0 0.0
        %578 = vmatpush1.xpose.msra.mxu0 0.0
        %579 = vmatprep.subr.mxu0 0.0
        %580 = vmatpush1.xpose.msra.mxu0 0.0
        %581 = vmatprep.subr.mxu0 0.0
        %582 = vmatpush1.xpose.msra.mxu0 0.0
        %583 = vmatprep.subr.mxu0 0.0
        %584 = vmatpush1.xpose.msra.mxu0 0.0
        %585 = vmatprep.subr.mxu0 0.0
        %586 = vmatpush1.xpose.msra.mxu0 0.0
        %587 = vmatprep.subr.mxu0 0.0
        %588 = vmatpush1.xpose.msra.mxu0 0.0
        %589 = vmatprep.subr.mxu0 0.0
        %590 = vmatpush1.xpose.msra.mxu0 0.0
        %591 = vmatprep.subr.mxu0 0.0
        %592 = vmatpush1.xpose.msra.mxu0 0.0
        %593 = vmatprep.subr.mxu0 0.0
        %594 = vmatpush1.xpose.msra.mxu0 0.0
        %595 = vmatprep.subr.mxu0 0.0
        %596 = vmatpush1.xpose.msra.mxu0 0.0
        %597 = vmatprep.subr.mxu0 0.0
        %598 = vmatpush1.xpose.msra.mxu0 0.0
        %599 = vmatprep.subr.mxu0 0.0
        %600 = vmatpush1.xpose.msra.mxu0 0.0
        %601 = vmatprep.subr.mxu0 0.0
        %602 = vmatpush1.xpose.msra.mxu0 0.0
        %603 = vmatprep.subr.mxu0 0.0
        %604 = vmatpush1.xpose.msra.mxu0 0.0
        %605 = vmatprep.subr.mxu0 0.0
        %606 = vmatpush1.xpose.msra.mxu0 0.0
        %607 = vmatprep.subr.mxu0 0.0
        %608 = vmatpush1.xpose.msra.mxu0 0.0
        %609 = vmatprep.subr.mxu0 0.0
        %610 = vmatpush1.xpose.msra.mxu0 0.0
        %611 = vmatprep.subr.mxu0 0.0
        %612 = vmatpush1.xpose.msra.mxu0 0.0
        %613 = vmatprep.subr.mxu0 0.0
        %614 = vmatpush1.xpose.msra.mxu0 0.0
        %615 = vmatprep.subr.mxu0 0.0
        %616 = vmatpush1.xpose.msra.mxu0 0.0
        %617 = vmatprep.subr.mxu0 0.0
        %618 = vmatpush1.xpose.msra.mxu0 0.0
        %619 = vmatprep.subr.mxu0 0.0
        %620 = vmatpush1.xpose.msra.mxu0 0.0
        %621 = vmatprep.subr.mxu0 0.0
        %622 = vmatpush1.xpose.msra.mxu0 0.0
        %623 = vmatprep.subr.mxu0 0.0
        %624 = vmatpush1.xpose.msra.mxu0 0.0
        %625 = vmatprep.subr.mxu0 0.0
        %626 = vmatpush1.xpose.msra.mxu0 0.0
        %627 = vmatprep.subr.mxu0 0.0
        %628 = vmatpush1.xpose.msra.mxu0 0.0
        %629 = vmatprep.subr.mxu0 0.0
        %630 = vmatpush1.xpose.msra.mxu0 0.0
        %631 = vmatprep.subr.mxu0 0.0
        %632 = vmatpush1.xpose.msra.mxu0 0.0
        %633 = vmatprep.subr.mxu0 0.0
        %634 = vmatpush1.xpose.msra.mxu0 0.0
        %635 = vmatprep.subr.mxu0 0.0
        %636 = vmatpush1.xpose.msra.mxu0 0.0
        %637 = vmatprep.mubr.f32.mxu0 0.0
        %638 = vmatmul.mubr.f32.gmra.mrb[0].mxu0 %v569
        %v639 = vpop.f32.mrb[0].mxu0
        %v640 = vadd.f32 0.0, %v639
        %v641 = vpop.f32.mrb[0].mxu0
        %642 = vdwg.mxu0
        %v643 = vmul.f32 %v640, 0.35355338
        %v644 = vadd.f32 %v643, %v564
        %v645 = vsel %vm568, %v644, -inf
        %646 = vmax.xlane.f32.xlu0 %v645
        %v647 = vpop.xlane.xlu0 %646
        %v648 = vsub.f32 %v644, %v647
        %v649 = vmul.f32 %v648, 1.442695
        %v650 = vpow.pop %v649
        %v651 = vsel %vm568, %v650, 0.0
        %652 = vadd.xlane.f32.xlu0 %v651
        %v653 = vpop.xlane.xlu0 %652
        %v654 = vrcp.pop %v653
        %v655 = vmul.f32 %v650, %v654
        %v656 = vpack.c.bf16 %v655, %v655
        %vm657 = vcmask 60416
        %658 = vst.msk [vmem:[%s484] sm:$0xf] %vm657, %v656
        %659 = vrot.lane.b32.xlu0 %v554, 64
        %v660 = vpop.permute.xlu0 %659
        %v663 = vsel %vm568, %v655, 0
        %665 = vmatprep.subr.mxu0 0.0
        %666 = vmatpush1.msra.mxu0 %v660
        %667 = vmatprep.subr.mxu0 0.0
        %668 = vmatpush1.msra.mxu0 0.0
        %669 = vmatprep.subr.mxu0 0.0
        %670 = vmatpush1.msra.mxu0 0.0
        %671 = vmatprep.subr.mxu0 0.0
        %672 = vmatpush1.msra.mxu0 0.0
        %673 = vmatprep.subr.mxu0 0.0
        %674 = vmatpush1.msra.mxu0 0.0
        %675 = vmatprep.subr.mxu0 0.0
        %676 = vmatpush1.msra.mxu0 0.0
        %677 = vmatprep.subr.mxu0 0.0
        %678 = vmatpush1.msra.mxu0 0.0
        %679 = vmatprep.subr.mxu0 0.0
        %680 = vmatpush1.msra.mxu0 0.0
        %681 = vmatprep.subr.mxu0 0.0
        %682 = vmatpush1.msra.mxu0 0.0
        %683 = vmatprep.subr.mxu0 0.0
        %684 = vmatpush1.msra.mxu0 0.0
        %685 = vmatprep.subr.mxu0 0.0
        %686 = vmatpush1.msra.mxu0 0.0
        %687 = vmatprep.subr.mxu0 0.0
        %688 = vmatpush1.msra.mxu0 0.0
        %689 = vmatprep.subr.mxu0 0.0
        %690 = vmatpush1.msra.mxu0 0.0
        %691 = vmatprep.subr.mxu0 0.0
        %692 = vmatpush1.msra.mxu0 0.0
        %693 = vmatprep.subr.mxu0 0.0
        %694 = vmatpush1.msra.mxu0 0.0
        %695 = vmatprep.subr.mxu0 0.0
        %696 = vmatpush1.msra.mxu0 0.0
        %697 = vmatprep.subr.mxu0 0.0
        %698 = vmatpush1.msra.mxu0 0.0
        %699 = vmatprep.subr.mxu0 0.0
        %700 = vmatpush1.msra.mxu0 0.0
        %701 = vmatprep.subr.mxu0 0.0
        %702 = vmatpush1.msra.mxu0 0.0
        %703 = vmatprep.subr.mxu0 0.0
        %704 = vmatpush1.msra.mxu0 0.0
        %705 = vmatprep.subr.mxu0 0.0
        %706 = vmatpush1.msra.mxu0 0.0
        %707 = vmatprep.subr.mxu0 0.0
        %708 = vmatpush1.msra.mxu0 0.0
        %709 = vmatprep.subr.mxu0 0.0
        %710 = vmatpush1.msra.mxu0 0.0
        %711 = vmatprep.subr.mxu0 0.0
        %712 = vmatpush1.msra.mxu0 0.0
        %713 = vmatprep.subr.mxu0 0.0
        %714 = vmatpush1.msra.mxu0 0.0
        %715 = vmatprep.subr.mxu0 0.0
        %716 = vmatpush1.msra.mxu0 0.0
        %717 = vmatprep.subr.mxu0 0.0
        %718 = vmatpush1.msra.mxu0 0.0
        %719 = vmatprep.subr.mxu0 0.0
        %720 = vmatpush1.msra.mxu0 0.0
        %721 = vmatprep.subr.mxu0 0.0
        %722 = vmatpush1.msra.mxu0 0.0
        %723 = vmatprep.subr.mxu0 0.0
        %724 = vmatpush1.msra.mxu0 0.0
        %725 = vmatprep.subr.mxu0 0.0
        %726 = vmatpush1.msra.mxu0 0.0
        %727 = vmatprep.subr.mxu0 0.0
        %728 = vmatpush1.msra.mxu0 0.0
        %729 = vmatprep.mubr.f32.mxu0 0.0
        %730 = vmatmul.mubr.f32.gmra.mrb[0].mxu0 %v663
        %v731 = vpop.f32.mrb[0].mxu0
        %v732 = vadd.f32 0.0, %v731
        %v733 = vpop.f32.mrb[0].mxu0
        %734 = vdwg.mxu0
        %735 = vst.msk [vmem:[#allocation2] sm:$0xff] %vm568, %v732
        %736 = vrot.lane.b32.xlu0 %v554, 120
        %v737 = vpop.permute.xlu0 %736
        %738 = vrot.lane.b32.xlu0 %v554, 88
        %v739 = vpop.permute.xlu0 %738
        %v740 = vsel %vm568, %v737, 0
        %v742 = vsel %vm568, %v739, 0
        %744 = vmatprep.subr.mxu0 0.0
        %745 = vmatpush1.xpose.msra.mxu0 %v742
        %746 = vmatprep.subr.mxu0 0.0
        %747 = vmatpush1.xpose.msra.mxu0 0.0
        %748 = vmatprep.subr.mxu0 0.0
        %749 = vmatpush1.xpose.msra.mxu0 0.0
        %750 = vmatprep.subr.mxu0 0.0
        %751 = vmatpush1.xpose.msra.mxu0 0.0
        %752 = vmatprep.subr.mxu0 0.0
        %753 = vmatpush1.xpose.msra.mxu0 0.0
        %754 = vmatprep.subr.mxu0 0.0
        %755 = vmatpush1.xpose.msra.mxu0 0.0
        %756 = vmatprep.subr.mxu0 0.0
        %757 = vmatpush1.xpose.msra.mxu0 0.0
        %758 = vmatprep.subr.mxu0 0.0
        %759 = vmatpush1.xpose.msra.mxu0 0.0
        %760 = vmatprep.subr.mxu0 0.0
        %761 = vmatpush1.xpose.msra.mxu0 0.0
        %762 = vmatprep.subr.mxu0 0.0
        %763 = vmatpush1.xpose.msra.mxu0 0.0
        %764 = vmatprep.subr.mxu0 0.0
        %765 = vmatpush1.xpose.msra.mxu0 0.0
        %766 = vmatprep.subr.mxu0 0.0
        %767 = vmatpush1.xpose.msra.mxu0 0.0
        %768 = vmatprep.subr.mxu0 0.0
        %769 = vmatpush1.xpose.msra.mxu0 0.0
        %770 = vmatprep.subr.mxu0 0.0
        %771 = vmatpush1.xpose.msra.mxu0 0.0
        %772 = vmatprep.subr.mxu0 0.0
        %773 = vmatpush1.xpose.msra.mxu0 0.0
        %774 = vmatprep.subr.mxu0 0.0
        %775 = vmatpush1.xpose.msra.mxu0 0.0
        %776 = vmatprep.subr.mxu0 0.0
        %777 = vmatpush1.xpose.msra.mxu0 0.0
        %778 = vmatprep.subr.mxu0 0.0
        %779 = vmatpush1.xpose.msra.mxu0 0.0
        %780 = vmatprep.subr.mxu0 0.0
        %781 = vmatpush1.xpose.msra.mxu0 0.0
        %782 = vmatprep.subr.mxu0 0.0
        %783 = vmatpush1.xpose.msra.mxu0 0.0
        %784 = vmatprep.subr.mxu0 0.0
        %785 = vmatpush1.xpose.msra.mxu0 0.0
        %786 = vmatprep.subr.mxu0 0.0
        %787 = vmatpush1.xpose.msra.mxu0 0.0
        %788 = vmatprep.subr.mxu0 0.0
        %789 = vmatpush1.xpose.msra.mxu0 0.0
        %790 = vmatprep.subr.mxu0 0.0
        %791 = vmatpush1.xpose.msra.mxu0 0.0
        %792 = vmatprep.subr.mxu0 0.0
        %793 = vmatpush1.xpose.msra.mxu0 0.0
        %794 = vmatprep.subr.mxu0 0.0
        %795 = vmatpush1.xpose.msra.mxu0 0.0
        %796 = vmatprep.subr.mxu0 0.0
        %797 = vmatpush1.xpose.msra.mxu0 0.0
        %798 = vmatprep.subr.mxu0 0.0
        %799 = vmatpush1.xpose.msra.mxu0 0.0
        %800 = vmatprep.subr.mxu0 0.0
        %801 = vmatpush1.xpose.msra.mxu0 0.0
        %802 = vmatprep.subr.mxu0 0.0
        %803 = vmatpush1.xpose.msra.mxu0 0.0
        %804 = vmatprep.subr.mxu0 0.0
        %805 = vmatpush1.xpose.msra.mxu0 0.0
        %806 = vmatprep.subr.mxu0 0.0
        %807 = vmatpush1.xpose.msra.mxu0 0.0
        %808 = vmatprep.mubr.f32.mxu0 0.0
        %809 = vmatmul.mubr.f32.gmra.mrb[0].mxu0 %v740
        %v810 = vpop.f32.mrb[0].mxu0
        %v811 = vadd.f32 0.0, %v810
        %v812 = vpop.f32.mrb[0].mxu0
        %813 = vdwg.mxu0
        %v814 = vmul.f32 %v811, 0.35355338
        %v815 = vadd.f32 %v814, %v564
        %v816 = vsel %vm568, %v815, -inf
        %817 = vmax.xlane.f32.xlu0 %v816
        %v818 = vpop.xlane.xlu0 %817
        %v819 = vsub.f32 %v815, %v818
        %v820 = vmul.f32 %v819, 1.442695
        %v821 = vpow.pop %v820
        %v822 = vsel %vm568, %v821, 0.0
        %823 = vadd.xlane.f32.xlu0 %v822
        %v824 = vpop.xlane.xlu0 %823
        %v825 = vrcp.pop %v824
        %v826 = vmul.f32 %v821, %v825
        %v827 = vpack.c.bf16 %v826, %v826
        %s828 = scalar_lea.vmem %s484, 4 [#allocation7]
        %829 = vst.msk [vmem:[%s828] sm:$0xf] %vm657, %v827
        %830 = vrot.lane.b32.xlu0 %v554, 56
        %v831 = vpop.permute.xlu0 %830
        %v834 = vsel %vm568, %v826, 0
        %836 = vmatprep.subr.mxu0 0.0
        %837 = vmatpush1.msra.mxu0 %v831
        %838 = vmatprep.subr.mxu0 0.0
        %839 = vmatpush1.msra.mxu0 0.0
        %840 = vmatprep.subr.mxu0 0.0
        %841 = vmatpush1.msra.mxu0 0.0
        %842 = vmatprep.subr.mxu0 0.0
        %843 = vmatpush1.msra.mxu0 0.0
        %844 = vmatprep.subr.mxu0 0.0
        %845 = vmatpush1.msra.mxu0 0.0
        %846 = vmatprep.subr.mxu0 0.0
        %847 = vmatpush1.msra.mxu0 0.0
        %848 = vmatprep.subr.mxu0 0.0
        %849 = vmatpush1.msra.mxu0 0.0
        %850 = vmatprep.subr.mxu0 0.0
        %851 = vmatpush1.msra.mxu0 0.0
        %852 = vmatprep.subr.mxu0 0.0
        %853 = vmatpush1.msra.mxu0 0.0
        %854 = vmatprep.subr.mxu0 0.0
        %855 = vmatpush1.msra.mxu0 0.0
        %856 = vmatprep.subr.mxu0 0.0
        %857 = vmatpush1.msra.mxu0 0.0
        %858 = vmatprep.subr.mxu0 0.0
        %859 = vmatpush1.msra.mxu0 0.0
        %860 = vmatprep.subr.mxu0 0.0
        %861 = vmatpush1.msra.mxu0 0.0
        %862 = vmatprep.subr.mxu0 0.0
        %863 = vmatpush1.msra.mxu0 0.0
        %864 = vmatprep.subr.mxu0 0.0
        %865 = vmatpush1.msra.mxu0 0.0
        %866 = vmatprep.subr.mxu0 0.0
        %867 = vmatpush1.msra.mxu0 0.0
        %868 = vmatprep.subr.mxu0 0.0
        %869 = vmatpush1.msra.mxu0 0.0
        %870 = vmatprep.subr.mxu0 0.0
        %871 = vmatpush1.msra.mxu0 0.0
        %872 = vmatprep.subr.mxu0 0.0
        %873 = vmatpush1.msra.mxu0 0.0
        %874 = vmatprep.subr.mxu0 0.0
        %875 = vmatpush1.msra.mxu0 0.0
        %876 = vmatprep.subr.mxu0 0.0
        %877 = vmatpush1.msra.mxu0 0.0
        %878 = vmatprep.subr.mxu0 0.0
        %879 = vmatpush1.msra.mxu0 0.0
        %880 = vmatprep.subr.mxu0 0.0
        %881 = vmatpush1.msra.mxu0 0.0
        %882 = vmatprep.subr.mxu0 0.0
        %883 = vmatpush1.msra.mxu0 0.0
        %884 = vmatprep.subr.mxu0 0.0
        %885 = vmatpush1.msra.mxu0 0.0
        %886 = vmatprep.subr.mxu0 0.0
        %887 = vmatpush1.msra.mxu0 0.0
        %888 = vmatprep.subr.mxu0 0.0
        %889 = vmatpush1.msra.mxu0 0.0
        %890 = vmatprep.subr.mxu0 0.0
        %891 = vmatpush1.msra.mxu0 0.0
        %892 = vmatprep.subr.mxu0 0.0
        %893 = vmatpush1.msra.mxu0 0.0
        %894 = vmatprep.subr.mxu0 0.0
        %895 = vmatpush1.msra.mxu0 0.0
        %896 = vmatprep.subr.mxu0 0.0
        %897 = vmatpush1.msra.mxu0 0.0
        %898 = vmatprep.subr.mxu0 0.0
        %899 = vmatpush1.msra.mxu0 0.0
        %900 = vmatprep.mubr.f32.mxu0 0.0
        %901 = vmatmul.mubr.f32.gmra.mrb[0].mxu0 %v834
        %v902 = vpop.f32.mrb[0].mxu0
        %v903 = vadd.f32 0.0, %v902
        %v904 = vpop.f32.mrb[0].mxu0
        %905 = vdwg.mxu0
        %907 = vrot.lane.b32.xlu0 %v903, 8
        %v908 = vpop.permute.xlu0 %907
        %vm910 = vcmask 130112
        %911 = vst.msk [vmem:[#allocation2] sm:$0xff] %vm910, %v908
        %912 = vrot.lane.b32.xlu0 %v554, 112
        %v913 = vpop.permute.xlu0 %912
        %914 = vrot.lane.b32.xlu0 %v554, 80
        %v915 = vpop.permute.xlu0 %914
        %v916 = vsel %vm568, %v913, 0
        %v918 = vsel %vm568, %v915, 0
        %920 = vmatprep.subr.mxu0 0.0
        %921 = vmatpush1.xpose.msra.mxu0 %v918
        %922 = vmatprep.subr.mxu0 0.0
        %923 = vmatpush1.xpose.msra.mxu0 0.0
        %924 = vmatprep.subr.mxu0 0.0
        %925 = vmatpush1.xpose.msra.mxu0 0.0
        %926 = vmatprep.subr.mxu0 0.0
        %927 = vmatpush1.xpose.msra.mxu0 0.0
        %928 = vmatprep.subr.mxu0 0.0
        %929 = vmatpush1.xpose.msra.mxu0 0.0
        %930 = vmatprep.subr.mxu0 0.0
        %931 = vmatpush1.xpose.msra.mxu0 0.0
        %932 = vmatprep.subr.mxu0 0.0
        %933 = vmatpush1.xpose.msra.mxu0 0.0
        %934 = vmatprep.subr.mxu0 0.0
        %935 = vmatpush1.xpose.msra.mxu0 0.0
        %936 = vmatprep.subr.mxu0 0.0
        %937 = vmatpush1.xpose.msra.mxu0 0.0
        %938 = vmatprep.subr.mxu0 0.0
        %939 = vmatpush1.xpose.msra.mxu0 0.0
        %940 = vmatprep.subr.mxu0 0.0
        %941 = vmatpush1.xpose.msra.mxu0 0.0
        %942 = vmatprep.subr.mxu0 0.0
        %943 = vmatpush1.xpose.msra.mxu0 0.0
        %944 = vmatprep.subr.mxu0 0.0
        %945 = vmatpush1.xpose.msra.mxu0 0.0
        %946 = vmatprep.subr.mxu0 0.0
        %947 = vmatpush1.xpose.msra.mxu0 0.0
        %948 = vmatprep.subr.mxu0 0.0
        %949 = vmatpush1.xpose.msra.mxu0 0.0
        %950 = vmatprep.subr.mxu0 0.0
        %951 = vmatpush1.xpose.msra.mxu0 0.0
        %952 = vmatprep.subr.mxu0 0.0
        %953 = vmatpush1.xpose.msra.mxu0 0.0
        %954 = vmatprep.subr.mxu0 0.0
        %955 = vmatpush1.xpose.msra.mxu0 0.0
        %956 = vmatprep.subr.mxu0 0.0
        %957 = vmatpush1.xpose.msra.mxu0 0.0
        %958 = vmatprep.subr.mxu0 0.0
        %959 = vmatpush1.xpose.msra.mxu0 0.0
        %960 = vmatprep.subr.mxu0 0.0
        %961 = vmatpush1.xpose.msra.mxu0 0.0
        %962 = vmatprep.subr.mxu0 0.0
        %963 = vmatpush1.xpose.msra.mxu0 0.0
        %964 = vmatprep.subr.mxu0 0.0
        %965 = vmatpush1.xpose.msra.mxu0 0.0
        %966 = vmatprep.subr.mxu0 0.0
        %967 = vmatpush1.xpose.msra.mxu0 0.0
        %968 = vmatprep.subr.mxu0 0.0
        %969 = vmatpush1.xpose.msra.mxu0 0.0
        %970 = vmatprep.subr.mxu0 0.0
        %971 = vmatpush1.xpose.msra.mxu0 0.0
        %972 = vmatprep.subr.mxu0 0.0
        %973 = vmatpush1.xpose.msra.mxu0 0.0
        %974 = vmatprep.subr.mxu0 0.0
        %975 = vmatpush1.xpose.msra.mxu0 0.0
        %976 = vmatprep.subr.mxu0 0.0
        %977 = vmatpush1.xpose.msra.mxu0 0.0
        %978 = vmatprep.subr.mxu0 0.0
        %979 = vmatpush1.xpose.msra.mxu0 0.0
        %980 = vmatprep.subr.mxu0 0.0
        %981 = vmatpush1.xpose.msra.mxu0 0.0
        %982 = vmatprep.subr.mxu0 0.0
        %983 = vmatpush1.xpose.msra.mxu0 0.0
        %984 = vmatprep.mubr.f32.mxu0 0.0
        %985 = vmatmul.mubr.f32.gmra.mrb[0].mxu0 %v916
        %v986 = vpop.f32.mrb[0].mxu0
        %v987 = vadd.f32 0.0, %v986
        %v988 = vpop.f32.mrb[0].mxu0
        %989 = vdwg.mxu0
        %v990 = vmul.f32 %v987, 0.35355338
        %v991 = vadd.f32 %v990, %v564
        %v992 = vsel %vm568, %v991, -inf
        %993 = vmax.xlane.f32.xlu0 %v992
        %v994 = vpop.xlane.xlu0 %993
        %v995 = vsub.f32 %v991, %v994
        %v996 = vmul.f32 %v995, 1.442695
        %v997 = vpow.pop %v996
        %v998 = vsel %vm568, %v997, 0.0
        %999 = vadd.xlane.f32.xlu0 %v998
        %v1000 = vpop.xlane.xlu0 %999
        %v1001 = vrcp.pop %v1000
        %v1002 = vmul.f32 %v997, %v1001
        %v1003 = vpack.c.bf16 %v1002, %v1002
        %s1004 = scalar_lea.vmem %s484, 8 [#allocation7]
        %1005 = vst.msk [vmem:[%s1004] sm:$0xf] %vm657, %v1003
        %1006 = vrot.lane.b32.xlu0 %v554, 48
        %v1007 = vpop.permute.xlu0 %1006
        %v1010 = vsel %vm568, %v1002, 0
        %1012 = vmatprep.subr.mxu0 0.0
        %1013 = vmatpush1.msra.mxu0 %v1007
        %1014 = vmatprep.subr.mxu0 0.0
        %1015 = vmatpush1.msra.mxu0 0.0
        %1016 = vmatprep.subr.mxu0 0.0
        %1017 = vmatpush1.msra.mxu0 0.0
        %1018 = vmatprep.subr.mxu0 0.0
        %1019 = vmatpush1.msra.mxu0 0.0
        %1020 = vmatprep.subr.mxu0 0.0
        %1021 = vmatpush1.msra.mxu0 0.0
        %1022 = vmatprep.subr.mxu0 0.0
        %1023 = vmatpush1.msra.mxu0 0.0
        %1024 = vmatprep.subr.mxu0 0.0
        %1025 = vmatpush1.msra.mxu0 0.0
        %1026 = vmatprep.subr.mxu0 0.0
        %1027 = vmatpush1.msra.mxu0 0.0
        %1028 = vmatprep.subr.mxu0 0.0
        %1029 = vmatpush1.msra.mxu0 0.0
        %1030 = vmatprep.subr.mxu0 0.0
        %1031 = vmatpush1.msra.mxu0 0.0
        %1032 = vmatprep.subr.mxu0 0.0
        %1033 = vmatpush1.msra.mxu0 0.0
        %1034 = vmatprep.subr.mxu0 0.0
        %1035 = vmatpush1.msra.mxu0 0.0
        %1036 = vmatprep.subr.mxu0 0.0
        %1037 = vmatpush1.msra.mxu0 0.0
        %1038 = vmatprep.subr.mxu0 0.0
        %1039 = vmatpush1.msra.mxu0 0.0
        %1040 = vmatprep.subr.mxu0 0.0
        %1041 = vmatpush1.msra.mxu0 0.0
        %1042 = vmatprep.subr.mxu0 0.0
        %1043 = vmatpush1.msra.mxu0 0.0
        %1044 = vmatprep.subr.mxu0 0.0
        %1045 = vmatpush1.msra.mxu0 0.0
        %1046 = vmatprep.subr.mxu0 0.0
        %1047 = vmatpush1.msra.mxu0 0.0
        %1048 = vmatprep.subr.mxu0 0.0
        %1049 = vmatpush1.msra.mxu0 0.0
        %1050 = vmatprep.subr.mxu0 0.0
        %1051 = vmatpush1.msra.mxu0 0.0
        %1052 = vmatprep.subr.mxu0 0.0
        %1053 = vmatpush1.msra.mxu0 0.0
        %1054 = vmatprep.subr.mxu0 0.0
        %1055 = vmatpush1.msra.mxu0 0.0
        %1056 = vmatprep.subr.mxu0 0.0
        %1057 = vmatpush1.msra.mxu0 0.0
        %1058 = vmatprep.subr.mxu0 0.0
        %1059 = vmatpush1.msra.mxu0 0.0
        %1060 = vmatprep.subr.mxu0 0.0
        %1061 = vmatpush1.msra.mxu0 0.0
        %1062 = vmatprep.subr.mxu0 0.0
        %1063 = vmatpush1.msra.mxu0 0.0
        %1064 = vmatprep.subr.mxu0 0.0
        %1065 = vmatpush1.msra.mxu0 0.0
        %1066 = vmatprep.subr.mxu0 0.0
        %1067 = vmatpush1.msra.mxu0 0.0
        %1068 = vmatprep.subr.mxu0 0.0
        %1069 = vmatpush1.msra.mxu0 0.0
        %1070 = vmatprep.subr.mxu0 0.0
        %1071 = vmatpush1.msra.mxu0 0.0
        %1072 = vmatprep.subr.mxu0 0.0
        %1073 = vmatpush1.msra.mxu0 0.0
        %1074 = vmatprep.subr.mxu0 0.0
        %1075 = vmatpush1.msra.mxu0 0.0
        %1076 = vmatprep.mubr.f32.mxu0 0.0
        %1077 = vmatmul.mubr.f32.gmra.mrb[0].mxu0 %v1010
        %v1078 = vpop.f32.mrb[0].mxu0
        %v1079 = vadd.f32 0.0, %v1078
        %v1080 = vpop.f32.mrb[0].mxu0
        %1081 = vdwg.mxu0
        %1083 = vrot.lane.b32.xlu0 %v1079, 16
        %v1084 = vpop.permute.xlu0 %1083
        %vm1086 = vcmask 195712
        %1087 = vst.msk [vmem:[#allocation2] sm:$0xff] %vm1086, %v1084
        %1088 = vrot.lane.b32.xlu0 %v554, 104
        %v1089 = vpop.permute.xlu0 %1088
        %1090 = vrot.lane.b32.xlu0 %v554, 72
        %v1091 = vpop.permute.xlu0 %1090
        %v1092 = vsel %vm568, %v1089, 0
        %v1094 = vsel %vm568, %v1091, 0
        %1096 = vmatprep.subr.mxu0 0.0
        %1097 = vmatpush1.xpose.msra.mxu0 %v1094
        %1098 = vmatprep.subr.mxu0 0.0
        %1099 = vmatpush1.xpose.msra.mxu0 0.0
        %1100 = vmatprep.subr.mxu0 0.0
        %1101 = vmatpush1.xpose.msra.mxu0 0.0
        %1102 = vmatprep.subr.mxu0 0.0
        %1103 = vmatpush1.xpose.msra.mxu0 0.0
        %1104 = vmatprep.subr.mxu0 0.0
        %1105 = vmatpush1.xpose.msra.mxu0 0.0
        %1106 = vmatprep.subr.mxu0 0.0
        %1107 = vmatpush1.xpose.msra.mxu0 0.0
        %1108 = vmatprep.subr.mxu0 0.0
        %1109 = vmatpush1.xpose.msra.mxu0 0.0
        %1110 = vmatprep.subr.mxu0 0.0
        %1111 = vmatpush1.xpose.msra.mxu0 0.0
        %1112 = vmatprep.subr.mxu0 0.0
        %1113 = vmatpush1.xpose.msra.mxu0 0.0
        %1114 = vmatprep.subr.mxu0 0.0
        %1115 = vmatpush1.xpose.msra.mxu0 0.0
        %1116 = vmatprep.subr.mxu0 0.0
        %1117 = vmatpush1.xpose.msra.mxu0 0.0
        %1118 = vmatprep.subr.mxu0 0.0
        %1119 = vmatpush1.xpose.msra.mxu0 0.0
        %1120 = vmatprep.subr.mxu0 0.0
        %1121 = vmatpush1.xpose.msra.mxu0 0.0
        %1122 = vmatprep.subr.mxu0 0.0
        %1123 = vmatpush1.xpose.msra.mxu0 0.0
        %1124 = vmatprep.subr.mxu0 0.0
        %1125 = vmatpush1.xpose.msra.mxu0 0.0
        %1126 = vmatprep.subr.mxu0 0.0
        %1127 = vmatpush1.xpose.msra.mxu0 0.0
        %1128 = vmatprep.subr.mxu0 0.0
        %1129 = vmatpush1.xpose.msra.mxu0 0.0
        %1130 = vmatprep.subr.mxu0 0.0
        %1131 = vmatpush1.xpose.msra.mxu0 0.0
        %1132 = vmatprep.subr.mxu0 0.0
        %1133 = vmatpush1.xpose.msra.mxu0 0.0
        %1134 = vmatprep.subr.mxu0 0.0
        %1135 = vmatpush1.xpose.msra.mxu0 0.0
        %1136 = vmatprep.subr.mxu0 0.0
        %1137 = vmatpush1.xpose.msra.mxu0 0.0
        %1138 = vmatprep.subr.mxu0 0.0
        %1139 = vmatpush1.xpose.msra.mxu0 0.0
        %1140 = vmatprep.subr.mxu0 0.0
        %1141 = vmatpush1.xpose.msra.mxu0 0.0
        %1142 = vmatprep.subr.mxu0 0.0
        %1143 = vmatpush1.xpose.msra.mxu0 0.0
        %1144 = vmatprep.subr.mxu0 0.0
        %1145 = vmatpush1.xpose.msra.mxu0 0.0
        %1146 = vmatprep.subr.mxu0 0.0
        %1147 = vmatpush1.xpose.msra.mxu0 0.0
        %1148 = vmatprep.subr.mxu0 0.0
        %1149 = vmatpush1.xpose.msra.mxu0 0.0
        %1150 = vmatprep.subr.mxu0 0.0
        %1151 = vmatpush1.xpose.msra.mxu0 0.0
        %1152 = vmatprep.subr.mxu0 0.0
        %1153 = vmatpush1.xpose.msra.mxu0 0.0
        %1154 = vmatprep.subr.mxu0 0.0
        %1155 = vmatpush1.xpose.msra.mxu0 0.0
        %1156 = vmatprep.subr.mxu0 0.0
        %1157 = vmatpush1.xpose.msra.mxu0 0.0
        %1158 = vmatprep.subr.mxu0 0.0
        %1159 = vmatpush1.xpose.msra.mxu0 0.0
        %1160 = vmatprep.mubr.f32.mxu0 0.0
        %1161 = vmatmul.mubr.f32.gmra.mrb[0].mxu0 %v1092
        %v1162 = vpop.f32.mrb[0].mxu0
        %v1163 = vadd.f32 0.0, %v1162
        %v1164 = vpop.f32.mrb[0].mxu0
        %1165 = vdwg.mxu0
        %v1166 = vmul.f32 %v1163, 0.35355338
        %v1167 = vadd.f32 %v1166, %v564
        %v1168 = vsel %vm568, %v1167, -inf
        %1169 = vmax.xlane.f32.xlu0 %v1168
        %v1170 = vpop.xlane.xlu0 %1169
        %v1171 = vsub.f32 %v1167, %v1170
        %v1172 = vmul.f32 %v1171, 1.442695
        %v1173 = vpow.pop %v1172
        %v1174 = vsel %vm568, %v1173, 0.0
        %1175 = vadd.xlane.f32.xlu0 %v1174
        %v1176 = vpop.xlane.xlu0 %1175
        %v1177 = vrcp.pop %v1176
        %v1178 = vmul.f32 %v1173, %v1177
        %v1179 = vpack.c.bf16 %v1178, %v1178
        %s1180 = scalar_lea.vmem %s484, 12 [#allocation7]
        %1181 = vst.msk [vmem:[%s1180] sm:$0xf] %vm657, %v1179
        %1182 = vrot.lane.b32.xlu0 %v554, 40
        %v1183 = vpop.permute.xlu0 %1182
        %v1186 = vsel %vm568, %v1178, 0
        %1188 = vmatprep.subr.mxu0 0.0
        %1189 = vmatpush1.msra.mxu0 %v1183
        %1190 = vmatprep.subr.mxu0 0.0
        %1191 = vmatpush1.msra.mxu0 0.0
        %1192 = vmatprep.subr.mxu0 0.0
        %1193 = vmatpush1.msra.mxu0 0.0
        %1194 = vmatprep.subr.mxu0 0.0
        %1195 = vmatpush1.msra.mxu0 0.0
        %1196 = vmatprep.subr.mxu0 0.0
        %1197 = vmatpush1.msra.mxu0 0.0
        %1198 = vmatprep.subr.mxu0 0.0
        %1199 = vmatpush1.msra.mxu0 0.0
        %1200 = vmatprep.subr.mxu0 0.0
        %1201 = vmatpush1.msra.mxu0 0.0
        %1202 = vmatprep.subr.mxu0 0.0
        %1203 = vmatpush1.msra.mxu0 0.0
        %1204 = vmatprep.subr.mxu0 0.0
        %1205 = vmatpush1.msra.mxu0 0.0
        %1206 = vmatprep.subr.mxu0 0.0
        %1207 = vmatpush1.msra.mxu0 0.0
        %1208 = vmatprep.subr.mxu0 0.0
        %1209 = vmatpush1.msra.mxu0 0.0
        %1210 = vmatprep.subr.mxu0 0.0
        %1211 = vmatpush1.msra.mxu0 0.0
        %1212 = vmatprep.subr.mxu0 0.0
        %1213 = vmatpush1.msra.mxu0 0.0
        %1214 = vmatprep.subr.mxu0 0.0
        %1215 = vmatpush1.msra.mxu0 0.0
        %1216 = vmatprep.subr.mxu0 0.0
        %1217 = vmatpush1.msra.mxu0 0.0
        %1218 = vmatprep.subr.mxu0 0.0
        %1219 = vmatpush1.msra.mxu0 0.0
        %1220 = vmatprep.subr.mxu0 0.0
        %1221 = vmatpush1.msra.mxu0 0.0
        %1222 = vmatprep.subr.mxu0 0.0
        %1223 = vmatpush1.msra.mxu0 0.0
        %1224 = vmatprep.subr.mxu0 0.0
        %1225 = vmatpush1.msra.mxu0 0.0
        %1226 = vmatprep.subr.mxu0 0.0
        %1227 = vmatpush1.msra.mxu0 0.0
        %1228 = vmatprep.subr.mxu0 0.0
        %1229 = vmatpush1.msra.mxu0 0.0
        %1230 = vmatprep.subr.mxu0 0.0
        %1231 = vmatpush1.msra.mxu0 0.0
        %1232 = vmatprep.subr.mxu0 0.0
        %1233 = vmatpush1.msra.mxu0 0.0
        %1234 = vmatprep.subr.mxu0 0.0
        %1235 = vmatpush1.msra.mxu0 0.0
        %1236 = vmatprep.subr.mxu0 0.0
        %1237 = vmatpush1.msra.mxu0 0.0
        %1238 = vmatprep.subr.mxu0 0.0
        %1239 = vmatpush1.msra.mxu0 0.0
        %1240 = vmatprep.subr.mxu0 0.0
        %1241 = vmatpush1.msra.mxu0 0.0
        %1242 = vmatprep.subr.mxu0 0.0
        %1243 = vmatpush1.msra.mxu0 0.0
        %1244 = vmatprep.subr.mxu0 0.0
        %1245 = vmatpush1.msra.mxu0 0.0
        %1246 = vmatprep.subr.mxu0 0.0
        %1247 = vmatpush1.msra.mxu0 0.0
        %1248 = vmatprep.subr.mxu0 0.0
        %1249 = vmatpush1.msra.mxu0 0.0
        %1250 = vmatprep.subr.mxu0 0.0
        %1251 = vmatpush1.msra.mxu0 0.0
        %1252 = vmatprep.mubr.f32.mxu0 0.0
        %1253 = vmatmul.mubr.f32.gmra.mrb[0].mxu0 %v1186
        %v1254 = vpop.f32.mrb[0].mxu0
        %v1255 = vadd.f32 0.0, %v1254
        %v1256 = vpop.f32.mrb[0].mxu0
        %1257 = vdwg.mxu0
        %1259 = vrot.lane.b32.xlu0 %v1255, 24
        %v1260 = vpop.permute.xlu0 %1259
        %vm1262 = vcmask 261312
        %1263 = vst.msk [vmem:[#allocation2] sm:$0xff] %vm1262, %v1260
        %v1264 = vld [vmem:[#allocation2] sm:$0xff]
        %v1265 = vpack.c.bf16 %v1264, %v1264
        %v1266 = vld [vmem:[%s3] sm:$0xf]
        %v1267 = vld [vmem:[%s3 + $0x4] sm:$0xf]
        %v1268 = vld [vmem:[%s3 + $0x8] sm:$0xf]
        %v1269 = vld [vmem:[%s3 + $0xc] sm:$0xf]
        %v1270 = vld [vmem:[%s4] sm:$0x1]
        %v1272 = vlaneseq
        %v1273 = vshrl.u32 %v1272, 7
        %v1274 = vsub.s32 0, %v1273
        %v1275 = vrot.slane %v1270, %v1274
        %v1281 = vunpack.c.l.b16 %v1266
        %v1282 = vunpack.c.l.b16 %v1267
        %v1283 = vunpack.c.l.b16 %v1268
        %v1284 = vunpack.c.l.b16 %v1269
        %v1285 = vpack.c.b16 %v1282, %v1281
        %v1286 = vpack.c.b16 %v1284, %v1283
        %v1290 = vsel %vm515, %v1265, 0
        %1292 = vmatprep.subr.bf16.mxu0 0
        %1293 = vmatpush1.bf16.msra.mxu0 %v1285
        %1294 = vmatprep.subr.bf16.mxu0 0
        %1295 = vmatpush1.bf16.msra.mxu0 %v1286
        %1296 = vmatprep.subr.bf16.mxu0 0
        %1297 = vmatpush1.bf16.msra.mxu0 0
        %1298 = vmatprep.subr.bf16.mxu0 0
        %1299 = vmatpush1.bf16.msra.mxu0 0
        %1300 = vmatprep.subr.bf16.mxu0 0
        %1301 = vmatpush1.bf16.msra.mxu0 0
        %1302 = vmatprep.subr.bf16.mxu0 0
        %1303 = vmatpush1.bf16.msra.mxu0 0
        %1304 = vmatprep.subr.bf16.mxu0 0
        %1305 = vmatpush1.bf16.msra.mxu0 0
        %1306 = vmatprep.subr.bf16.mxu0 0
        %1307 = vmatpush1.bf16.msra.mxu0 0
        %1308 = vmatprep.subr.bf16.mxu0 0
        %1309 = vmatpush1.bf16.msra.mxu0 0
        %1310 = vmatprep.subr.bf16.mxu0 0
        %1311 = vmatpush1.bf16.msra.mxu0 0
        %1312 = vmatprep.subr.bf16.mxu0 0
        %1313 = vmatpush1.bf16.msra.mxu0 0
        %1314 = vmatprep.subr.bf16.mxu0 0
        %1315 = vmatpush1.bf16.msra.mxu0 0
        %1316 = vmatprep.subr.bf16.mxu0 0
        %1317 = vmatpush1.bf16.msra.mxu0 0
        %1318 = vmatprep.subr.bf16.mxu0 0
        %1319 = vmatpush1.bf16.msra.mxu0 0
        %1320 = vmatprep.subr.bf16.mxu0 0
        %1321 = vmatpush1.bf16.msra.mxu0 0
        %1322 = vmatprep.subr.bf16.mxu0 0
        %1323 = vmatpush1.bf16.msra.mxu0 0
        %1324 = vmatprep.mubr.bf16.mxu0 0
        %1325 = vmatmul.mubr.bf16.gmra.mrb[0].mxu0 %v1290
        %v1326 = vpop.f32.mrb[0].mxu0
        %v1327 = vadd.f32 %v1275, %v1326
        %v1328 = vpop.f32.mrb[0].mxu0
        %v1329 = vpop.f32.mrb[0].mxu0
        %v1330 = vpop.f32.mrb[0].mxu0
        %1331 = vdwg.mxu0
        %v1332 = vadd.f32 %v1327, %v490
        %v1333 = vld [vmem:[%s5] sm:$0x1]
        %v1334 = vld [vmem:[%s6] sm:$0x1]
        %v1335 = vsel %vm515, %v1332, 0.0
        %1336 = vadd.xlane.f32.xlu0 %v1335
        %v1337 = vpop.xlane.xlu0 %1336
        %v1338 = vrcp.pop 32.0
        %v1339 = vmul.f32 %v1337, %v1338
        %v1340 = vsub.f32 %v1332, %v1339
        %v1341 = vmul.f32 %v1340, %v1340
        %v1342 = vsel %vm515, %v1341, 0.0
        %1343 = vadd.xlane.f32.xlu0 %v1342
        %v1344 = vpop.xlane.xlu0 %1343
        %v1345 = vmul.f32 %v1344, %v1338
        %v1346 = vadd.f32 %v1345, 1e-05
        %v1347 = vrsqrt.pop %v1346
        %v1348 = vmul.f32 %v1340, %v1347
        %v1350 = vlaneseq
        %v1351 = vshrl.u32 %v1350, 7
        %v1352 = vsub.s32 0, %v1351
        %v1353 = vrot.slane %v1333, %v1352
        %v1355 = vmul.f32 %v1348, %v1353
        %v1357 = vlaneseq
        %v1358 = vshrl.u32 %v1357, 7
        %v1359 = vsub.s32 0, %v1358
        %v1360 = vrot.slane %v1334, %v1359
        %v1362 = vadd.f32 %v1355, %v1360
        %v1363 = vpack.c.bf16 %v1362, %v1362
        %v1364 = vld [vmem:[#allocation3] sm:$0xf]
        %v1365 = vld [vmem:[#allocation3 + $0x4] sm:$0xf]
        %v1366 = vld [vmem:[#allocation3 + $0x8] sm:$0xf]
        %v1367 = vld [vmem:[#allocation3 + $0xc] sm:$0xf]
        %v1368 = vld [vmem:[%s8] sm:$0x1]
        %v1370 = vlaneseq
        %v1371 = vshrl.u32 %v1370, 7
        %v1372 = vsub.s32 0, %v1371
        %v1373 = vrot.slane %v1368, %v1372
        %v1379 = vunpack.c.l.b16 %v1364
        %v1380 = vunpack.c.l.b16 %v1365
        %v1381 = vunpack.c.l.b16 %v1366
        %v1382 = vunpack.c.l.b16 %v1367
        %v1383 = vpack.c.b16 %v1380, %v1379
        %v1384 = vpack.c.b16 %v1382, %v1381
        %v1388 = vsel %vm515, %v1363, 0
        %1390 = vmatprep.subr.bf16.mxu0 0
        %1391 = vmatpush1.bf16.msra.mxu0 %v1383
        %1392 = vmatprep.subr.bf16.mxu0 0
        %1393 = vmatpush1.bf16.msra.mxu0 %v1384
        %1394 = vmatprep.subr.bf16.mxu0 0
        %1395 = vmatpush1.bf16.msra.mxu0 0
        %1396 = vmatprep.subr.bf16.mxu0 0
        %1397 = vmatpush1.bf16.msra.mxu0 0
        %1398 = vmatprep.subr.bf16.mxu0 0
        %1399 = vmatpush1.bf16.msra.mxu0 0
        %1400 = vmatprep.subr.bf16.mxu0 0
        %1401 = vmatpush1.bf16.msra.mxu0 0
        %1402 = vmatprep.subr.bf16.mxu0 0
        %1403 = vmatpush1.bf16.msra.mxu0 0
        %1404 = vmatprep.subr.bf16.mxu0 0
        %1405 = vmatpush1.bf16.msra.mxu0 0
        %1406 = vmatprep.subr.bf16.mxu0 0
        %1407 = vmatpush1.bf16.msra.mxu0 0
        %1408 = vmatprep.subr.bf16.mxu0 0
        %1409 = vmatpush1.bf16.msra.mxu0 0
        %1410 = vmatprep.subr.bf16.mxu0 0
        %1411 = vmatpush1.bf16.msra.mxu0 0
        %1412 = vmatprep.subr.bf16.mxu0 0
        %1413 = vmatpush1.bf16.msra.mxu0 0
        %1414 = vmatprep.subr.bf16.mxu0 0
        %1415 = vmatpush1.bf16.msra.mxu0 0
        %1416 = vmatprep.subr.bf16.mxu0 0
        %1417 = vmatpush1.bf16.msra.mxu0 0
        %1418 = vmatprep.subr.bf16.mxu0 0
        %1419 = vmatpush1.bf16.msra.mxu0 0
        %1420 = vmatprep.subr.bf16.mxu0 0
        %1421 = vmatpush1.bf16.msra.mxu0 0
        %1422 = vmatprep.mubr.bf16.mxu0 0
        %1423 = vmatmul.mubr.bf16.gmra.mrb[0].mxu0 %v1388
        %v1424 = vpop.f32.mrb[0].mxu0
        %v1425 = vadd.f32 %v1373, %v1424
        %v1426 = vpop.f32.mrb[0].mxu0
        %v1427 = vpop.f32.mrb[0].mxu0
        %v1428 = vpop.f32.mrb[0].mxu0
        %1429 = vdwg.mxu0
        %v1430 = vmax.f32 %v1425, 0.0
        %v1431 = vpack.c.bf16 %v1430, %v1430
        %v1432 = vld [vmem:[%s9] sm:$0xf]
        %v1433 = vld [vmem:[%s9 + $0x4] sm:$0xf]
        %v1434 = vld [vmem:[%s9 + $0x8] sm:$0xf]
        %v1435 = vld [vmem:[%s9 + $0xc] sm:$0xf]
        %v1436 = vld [vmem:[%s9 + $0x10] sm:$0xf]
        %v1437 = vld [vmem:[%s9 + $0x14] sm:$0xf]
        %v1438 = vld [vmem:[%s9 + $0x18] sm:$0xf]
        %v1439 = vld [vmem:[%s9 + $0x1c] sm:$0xf]
        %v1440 = vld [vmem:[%s10] sm:$0x1]
        %v1442 = vlaneseq
        %v1443 = vshrl.u32 %v1442, 7
        %v1444 = vsub.s32 0, %v1443
        %v1445 = vrot.slane %v1440, %v1444
        %v1455 = vunpack.c.l.b16 %v1432
        %v1456 = vunpack.c.l.b16 %v1433
        %v1457 = vunpack.c.l.b16 %v1434
        %v1458 = vunpack.c.l.b16 %v1435
        %v1459 = vunpack.c.l.b16 %v1436
        %v1460 = vunpack.c.l.b16 %v1437
        %v1461 = vunpack.c.l.b16 %v1438
        %v1462 = vunpack.c.l.b16 %v1439
        %v1463 = vpack.c.b16 %v1456, %v1455
        %v1464 = vpack.c.b16 %v1458, %v1457
        %v1465 = vpack.c.b16 %v1460, %v1459
        %v1466 = vpack.c.b16 %v1462, %v1461
        %vm1471 = vcmask 523264
        %v1473 = vsel %vm1471, %v1431, 0
        %1475 = vmatprep.subr.bf16.mxu0 0
        %1476 = vmatpush1.bf16.msra.mxu0 %v1463
        %1477 = vmatprep.subr.bf16.mxu0 0
        %1478 = vmatpush1.bf16.msra.mxu0 %v1464
        %1479 = vmatprep.subr.bf16.mxu0 0
        %1480 = vmatpush1.bf16.msra.mxu0 %v1465
        %1481 = vmatprep.subr.bf16.mxu0 0
        %1482 = vmatpush1.bf16.msra.mxu0 %v1466
        %1483 = vmatprep.subr.bf16.mxu0 0
        %1484 = vmatpush1.bf16.msra.mxu0 0
        %1485 = vmatprep.subr.bf16.mxu0 0
        %1486 = vmatpush1.bf16.msra.mxu0 0
        %1487 = vmatprep.subr.bf16.mxu0 0
        %1488 = vmatpush1.bf16.msra.mxu0 0
        %1489 = vmatprep.subr.bf16.mxu0 0
        %1490 = vmatpush1.bf16.msra.mxu0 0
        %1491 = vmatprep.subr.bf16.mxu0 0
        %1492 = vmatpush1.bf16.msra.mxu0 0
        %1493 = vmatprep.subr.bf16.mxu0 0
        %1494 = vmatpush1.bf16.msra.mxu0 0
        %1495 = vmatprep.subr.bf16.mxu0 0
        %1496 = vmatpush1.bf16.msra.mxu0 0
        %1497 = vmatprep.subr.bf16.mxu0 0
        %1498 = vmatpush1.bf16.msra.mxu0 0
        %1499 = vmatprep.subr.bf16.mxu0 0
        %1500 = vmatpush1.bf16.msra.mxu0 0
        %1501 = vmatprep.subr.bf16.mxu0 0
        %1502 = vmatpush1.bf16.msra.mxu0 0
        %1503 = vmatprep.subr.bf16.mxu0 0
        %1504 = vmatpush1.bf16.msra.mxu0 0
        %1505 = vmatprep.subr.bf16.mxu0 0
        %1506 = vmatpush1.bf16.msra.mxu0 0
        %1507 = vmatprep.mubr.bf16.mxu0 0
        %1508 = vmatmul.mubr.bf16.gmra.mrb[0].mxu0 %v1473
        %v1509 = vpop.f32.mrb[0].mxu0
        %v1510 = vadd.f32 %v1445, %v1509
        %v1511 = vpop.f32.mrb[0].mxu0
        %v1512 = vpop.f32.mrb[0].mxu0
        %v1513 = vpop.f32.mrb[0].mxu0
        %1514 = vdwg.mxu0
        %v1515 = vadd.f32 %v1510, %v1362
        %v1516 = vld [vmem:[%s11] sm:$0x1]
        %v1517 = vld [vmem:[%s12] sm:$0x1]
        %v1518 = vsel %vm515, %v1515, 0.0
        %1519 = vadd.xlane.f32.xlu0 %v1518
        %v1520 = vpop.xlane.xlu0 %1519
        %v1521 = vmul.f32 %v1520, %v1338
        %v1522 = vsub.f32 %v1515, %v1521
        %v1523 = vmul.f32 %v1522, %v1522
        %v1524 = vsel %vm515, %v1523, 0.0
        %1525 = vadd.xlane.f32.xlu0 %v1524
        %v1526 = vpop.xlane.xlu0 %1525
        %v1527 = vmul.f32 %v1526, %v1338
        %v1528 = vadd.f32 %v1527, 1e-05
        %v1529 = vrsqrt.pop %v1528
        %v1530 = vmul.f32 %v1522, %v1529
        %v1532 = vlaneseq
        %v1533 = vshrl.u32 %v1532, 7
        %v1534 = vsub.s32 0, %v1533
        %v1535 = vrot.slane %v1516, %v1534
        %v1537 = vmul.f32 %v1530, %v1535
        %v1539 = vlaneseq
        %v1540 = vshrl.u32 %v1539, 7
        %v1541 = vsub.s32 0, %v1540
        %v1542 = vrot.slane %v1517, %v1541
        %v1544 = vadd.f32 %v1537, %v1542
        %1545 = vst.msk [vmem:[%s477] sm:$0xff] %vm515, %v1544
        %s1546 = sand.u32 %s319, 1
        %s1547 = scalar_lea.sflag [#allocation5], %s1546
        %s1548 = sand.u32 %s319, 1
        %s1549 = smul.addr %s1548, 8
        %s1550 = scalar_lea.vmem [#allocation6], %s1549
        %s1551 = sand.u32 %s345, 1
        %s1552 = scalar_lea.sflag [#allocation8], %s1551
        %s1553 = sand.u32 %s345, 1
        %s1554 = smul.addr %s1553, 16
        %s1555 = scalar_lea.vmem [#allocation7], %s1554
        // Predicated region
        $region77: #{tpu_custom_call.1} parent=71 // pred_check
          %p1556 = pneg %p329
        $region78: #{tpu_custom_call.1} parent=71 // pred_check_branch
          %1558 = sbr.rel (%p1556) target = $region80
        $region79: #{tpu_custom_call.1} parent=71 // pred_region
          %s1560 = ssub.s32 128, 128
          %1561 = vsyncadd %s1547, %s1560
          %s1562 = smul.addr %s33, 128
          %s1563 = scalar_lea.hbm %s13, %s1562
          %s1565 = sshll.u32 %s1550, 4
          %s1566 = int_to_ptr.vmem [resolvable:$true] %s1565
          %1568 = dma.vmem_to_hbm [thread:$0]  %s1566, 128, %s1563, %s1547
        $region80: #{tpu_custom_call.1} parent=71 // pred_fallthru
          _
        // Predicated region
        $region81: #{tpu_custom_call.1} parent=71 // pred_check
          %p1569 = pneg %p355
        $region82: #{tpu_custom_call.1} parent=71 // pred_check_branch
          %1571 = sbr.rel (%p1569) target = $region84
        $region83: #{tpu_custom_call.1} parent=71 // pred_region
          %s1573 = ssub.s32 256, 256
          %1574 = vsyncadd %s1552, %s1573
          %s1575 = smul.addr %s33, 4
          %s1576 = smul.addr %s1575, 64
          %s1577 = scalar_lea.hbm %s14, %s1576
          %s1578 = sshll.u32 %s1555, 4
          %s1579 = int_to_ptr.vmem [resolvable:$true] %s1578
          %1584 = dma.vmem_to_hbm [thread:$0]  %s1579, 256, %s1577, %s1552, 64, 64, 4
        $region84: #{tpu_custom_call.1} parent=71 // pred_fallthru
          _
      $region72: #{tpu_custom_call.1} parent=5 // pred_fallthru
        _
      %p1585 = scmp.le.s32.totalorder 2, %s28
      // Predicated region
      $region85: #{tpu_custom_call.1} parent=5 // pred_check
        %p1586 = pneg %p1585
      $region86: #{tpu_custom_call.1} parent=5 // pred_check_branch
        %1588 = sbr.rel (%p1586) target = $region88
      $region87: #{tpu_custom_call.1} parent=5 // pred_region
        %s1589 = ssub.s32 %s28, 2
        // Predicated region
        $region89: #{tpu_custom_call.1} parent=87 // pred_check
          %p1590 = pneg %p335
        $region90: #{tpu_custom_call.1} parent=87 // pred_check_branch
          %1592 = sbr.rel (%p1590) target = $region92
        $region91: #{tpu_custom_call.1} parent=87 // pred_region
          %s1593 = sand.u32 %s320, 1
          %s1594 = scalar_lea.sflag [#allocation5], %s1593
          %s1595 = sand.u32 %s320, 1
          %s1596 = smul.addr %s1595, 8
          %s1597 = scalar_lea.vmem [#allocation6], %s1596
          %1598 = dma.done %s1594, 128
        $region92: #{tpu_custom_call.1} parent=87 // pred_fallthru
          _
        // Predicated region
        $region93: #{tpu_custom_call.1} parent=87 // pred_check
          %p1599 = pneg %p361
        $region94: #{tpu_custom_call.1} parent=87 // pred_check_branch
          %1601 = sbr.rel (%p1599) target = $region96
        $region95: #{tpu_custom_call.1} parent=87 // pred_region
          %s1602 = sand.u32 %s346, 1
          %s1603 = scalar_lea.sflag [#allocation8], %s1602
          %s1604 = sand.u32 %s346, 1
          %s1605 = smul.addr %s1604, 16
          %s1606 = scalar_lea.vmem [#allocation7], %s1605
          %1607 = dma.done %s1603, 256
        $region96: #{tpu_custom_call.1} parent=87 // pred_fallthru
          _
      $region88: #{tpu_custom_call.1} parent=5 // pred_fallthru
        _
    $region6: #{tpu_custom_call.1} parent=1 // loop_footer
      %s32 = sadd.s32 1, %s28
    $region7: #{tpu_custom_call.1} parent=1 // loop_footer_branch
      %27 = sbr.rel target = $region3
    $region8: #{tpu_custom_call.1} parent=1 // loop_exit
      _
    %1608 = vsyncpa [#allocation4], 1
    %s1609 = scalar_lea.sflag [#allocation4], 1
    %1610 = vsyncpa %s1609, 1
    %1611 = vsyncpa [#allocation5], 1
    %s1612 = scalar_lea.sflag [#allocation5], 1
    %1613 = vsyncpa %s1612, 1
    %1614 = vsyncpa [#allocation8], 1
    %s1615 = scalar_lea.sflag [#allocation8], 1
    %1616 = vsyncpa %s1615, 1

</llo_original>
